<compile_context>
chip_gen: v7x
topology: tpu7x:2x2x1
jax: 0.10.0
libtpu: 0.0.40
codegen_flags: <defaults>
</compile_context>

<pallas_src>
import functools

import numpy as np

import jax
import jax.numpy as jnp
from jax.experimental import pallas as pl
from jax.experimental.pallas import tpu as pltpu

EPS = 1e-5


def _full_spec(shape):
    nd = len(shape)
    return pl.BlockSpec(shape, lambda *_: (0,) * nd)


# -----------------------------------------------------------------------------
# The fused decoder kernel: 3 ConvTranspose2d layers, everything VMEM-resident.
# -----------------------------------------------------------------------------
def _netg_kernel(z_ref, a1_ref, b1_ref, a2_ref, b2_ref, a3_ref, o_ref,
                 h1p_ref, h2p_ref, *, B, c1, c2, nc):
    f32 = jnp.float32
    bf16 = jnp.bfloat16

    # Zero only the vertical border rows; the interior rows are fully
    # overwritten by the scatters below and there are no horizontal pad lanes.
    zero1 = jnp.zeros((B, 4 * c1), bf16)
    h1p_ref[0:B, :] = zero1
    h1p_ref[5 * B:6 * B, :] = zero1
    zero2 = jnp.zeros((B, 8 * c2), bf16)
    h2p_ref[0:B, :] = zero2
    h2p_ref[9 * B:10 * B, :] = zero2

    # --- layer 1: ConvT(nz->c1, k4, s1, p0) on a 1x1 latent == one GEMM,
    #     BN folded into a1/b1, ReLU epilogue, single f32->bf16 cast.
    z = z_ref[...].astype(bf16)
    h1 = jnp.dot(z, a1_ref[...], preferred_element_type=f32)        # (B, 16*c1)
    h1b = jnp.maximum(h1 + b1_ref[...], 0.0).astype(bf16)
    # Scatter the 4 spatial rows into the vertically padded bf16 map
    # h1p: (6*B, 4*c1), row = Y*B + b, lane = X*c1 + ci  (Y in [0,6), X in [0,4)).
    for ih in range(4):
        h1p_ref[(1 + ih) * B:(2 + ih) * B, :] = \
            h1b[:, ih * 4 * c1:(ih + 1) * 4 * c1]

    # --- layer 2: ConvT(c1->c2, k4, s2, p1) via 2-phase (output-row parity)
    #     decomposition: 3 vertical-tap GEMMs against the pre-packed bf16 a2.
    y2 = b2_ref[...] + jnp.dot(h1p_ref[0:4 * B, :], a2_ref[0:4 * c1, :],
                               preferred_element_type=f32)          # (4B, 2*8*c2)
    for i in (1, 2):
        y2 = y2 + jnp.dot(h1p_ref[i * B:(i + 4) * B, :],
                          a2_ref[i * 4 * c1:(i + 1) * 4 * c1, :],
                          preferred_element_type=f32)
    y2b = jnp.maximum(y2, 0.0).astype(bf16)
    # Interleave the two row-phases into the vertically padded bf16 map
    # h2p: (10*B, 8*c2), row = Y*B + b, lane = X*c2 + ci  (Y in [0,10), X in [0,8)).
    for q in range(4):
        for po in range(2):
            dst = (1 + 2 * q + po) * B
            h2p_ref[dst:dst + B, :] = \
                y2b[q * B:(q + 1) * B, po * 8 * c2:(po + 1) * 8 * c2]

    # --- layer 3: ConvT(c2->nc, k4, s2, p1) + Tanh, same 2-phase structure.
    y3 = jnp.dot(h2p_ref[0:8 * B, :], a3_ref[0:8 * c2, :],
                 preferred_element_type=f32)                         # (8B, 2*16*nc)
    for i in (1, 2):
        y3 = y3 + jnp.dot(h2p_ref[i * B:(i + 8) * B, :],
                          a3_ref[i * 8 * c2:(i + 1) * 8 * c2, :],
                          preferred_element_type=f32)
    # Lane-dense output: (8B, 2*16*nc) = (16, 128), single full-tile store.
    o_ref[...] = jnp.tanh(y3).astype(o_ref.dtype)


# -----------------------------------------------------------------------------
# One-time parameter packing: BN folding + phase-expanded GEMM weights (bf16),
# with no horizontal zero-pad rows (taps landing in the pad are dropped).
# -----------------------------------------------------------------------------
def prepare_params(params):
    w1 = np.asarray(params["w1"], np.float32)   # (nz, c1, 4, 4)
    w2 = np.asarray(params["w2"], np.float32)   # (c1, c2, 4, 4)
    w3 = np.asarray(params["w3"], np.float32)   # (c2, nc, 4, 4)
    nz, c1 = w1.shape[0], w1.shape[1]
    c2, nc = w2.shape[1], w3.shape[1]

    def fold(g, b, m, v):
        g, b, m, v = (np.asarray(t, np.float32) for t in (g, b, m, v))
        s = g / np.sqrt(v + EPS)
        return s, b - m * s

    s1, t1 = fold(params["g1"], params["b1"], params["m1"], params["v1"])
    s2, t2 = fold(params["g2"], params["b2"], params["m2"], params["v2"])

    # Layer 1: col = ih*(4*c1) + iw*c1 + co  (NHWC order), BN scale folded.
    a1 = (np.transpose(w1, (0, 2, 3, 1)) * s1[None, None, None, :]
          ).reshape(nz, 16 * c1)
    b1 = np.tile(t1, 16).reshape(1, 16 * c1)

    def phase_weight(w, scale, in_w, cin, cout, ow_total):
        # ConvT k4 s2 p1, 2-phase (output-row parity) decomposition WITHOUT
        # horizontal padding lanes.
        # rows: (vertical tap i, input col X, ci); cols: (parity po, ow, co).
        # Taps whose X would land in the (always-zero) horizontal padding are
        # simply dropped from the packed weight.
        A = np.zeros((3 * in_w * cin, 2 * ow_total * cout), np.float32)
        for po in range(2):
            for dh in range(2):
                i = po + dh
                kh = 3 - 2 * dh - po
                for ow in range(ow_total):
                    r, pw = ow // 2, ow % 2
                    for dw in range(2):
                        X = r + pw + dw - 1            # real input column
                        if X < 0 or X >= in_w:
                            continue
                        kw = 3 - 2 * dw - pw
                        A[i * in_w * cin + X * cin:
                          i * in_w * cin + (X + 1) * cin,
                          po * ow_total * cout + ow * cout:
                          po * ow_total * cout + (ow + 1) * cout] += \
                            w[:, :, kh, kw] * scale[None, :]
        return A

    a2 = phase_weight(w2, s2, 4, c1, c2, 8)                         # (768, 512)
    b2 = np.tile(t2, 16).reshape(1, 2 * 8 * c2)                     # (1, 512)
    a3 = phase_weight(w3, np.ones(nc, np.float32), 8, c2, nc, 16)   # (768, 128)

    # TODO(synk): on v5e/v6e a2/a3 could be int8 (fp8 on v7x) with per-channel
    # scales folded into the f32 epilogue to halve the weight DMA again.
    return dict(nz=nz, c1=c1, c2=c2, nc=nc,
                a1=jnp.asarray(a1, jnp.bfloat16),
                b1=jnp.asarray(b1, jnp.float32),
                a2=jnp.asarray(a2, jnp.bfloat16),
                b2=jnp.asarray(b2, jnp.float32),
                a3=jnp.asarray(a3, jnp.bfloat16))


# -----------------------------------------------------------------------------
# NetG.forward: output = decoder(input).  One pallas_call + tiny NCHW reorder.
# -----------------------------------------------------------------------------
def netg_forward(prep, x_nchw):
    B, nz = x_nchw.shape[0], x_nchw.shape[1]
    c1, c2, nc = prep["c1"], prep["c2"], prep["nc"]
    z = x_nchw.reshape(B, nz).astype(jnp.float32)

    kern = functools.partial(_netg_kernel, B=B, c1=c1, c2=c2, nc=nc)
    out_shape = (8 * B, 2 * 16 * nc)
    # TODO(synk): the ~1 MiB weight fetch dominates a single call; batch more
    # latents per call (or keep weights resident via cross-call prefetch) and,
    # on v7x, add a leading batch grid axis with
    # dimension_semantics=("parallel",) once B grows to ~8+.
    o = pl.pallas_call(
        kern,
        out_shape=jax.ShapeDtypeStruct(out_shape, jnp.float32),
        in_specs=[_full_spec(z.shape),
                  _full_spec(prep["a1"].shape), _full_spec(prep["b1"].shape),
                  _full_spec(prep["a2"].shape), _full_spec(prep["b2"].shape),
                  _full_spec(prep["a3"].shape)],
        out_specs=_full_spec(out_shape),
        scratch_shapes=[pltpu.VMEM((6 * B, 4 * c1), jnp.bfloat16),
                        pltpu.VMEM((10 * B, 8 * c2), jnp.bfloat16)],
    )(z, prep["a1"], prep["b1"], prep["a2"], prep["b2"], prep["a3"])

    # rows = (u, b), cols = (po, ow, co)  ->  NCHW [b, co, 2u+po, ow]
    out = (o.reshape(8, B, 2, 16, nc)
             .transpose(1, 4, 0, 2, 3)
             .reshape(B, nc, 16, 16))
    return out


# -----------------------------------------------------------------------------
# Deterministic synthetic decoder parameters.
# -----------------------------------------------------------------------------
def init_decoder_params(key, nz=32, ngf=16, nc=4):
    c1, c2 = 4 * ngf, 2 * ngf
    ks = jax.random.split(key, 11)

    def w(k, shape):
        return (0.05 * jax.random.normal(k, shape)).astype(jnp.float32)

    return dict(
        w1=w(ks[0], (nz, c1, 4, 4)),
        g1=(1.0 + 0.1 * jax.random.normal(ks[1], (c1,))).astype(jnp.float32),
        b1=(0.1 * jax.random.normal(ks[2], (c1,))).astype(jnp.float32),
        m1=(0.05 * jax.random.normal(ks[3], (c1,))).astype(jnp.float32),
        v1=(1.0 + 0.1 * jnp.abs(jax.random.normal(ks[4], (c1,)))).astype(jnp.float32),
        w2=w(ks[5], (c1, c2, 4, 4)),
        g2=(1.0 + 0.1 * jax.random.normal(ks[6], (c2,))).astype(jnp.float32),
        b2=(0.1 * jax.random.normal(ks[7], (c2,))).astype(jnp.float32),
        m2=(0.05 * jax.random.normal(ks[8], (c2,))).astype(jnp.float32),
        v2=(1.0 + 0.1 * jnp.abs(jax.random.normal(ks[9], (c2,)))).astype(jnp.float32),
        w3=w(ks[10], (c2, nc, 4, 4)),
    )


# -----------------------------------------------------------------------------
# Pure-JAX reference (lax conv) for correctness verification.
# -----------------------------------------------------------------------------
def _ref_conv_transpose_nhwc(x, w_t, stride, pad):
    K = w_t.shape[2]
    w_hwio = jnp.transpose(w_t[:, :, ::-1, ::-1], (2, 3, 0, 1))
    return jax.lax.conv_general_dilated(
        x, w_hwio, window_strides=(1, 1),
        padding=[(K - 1 - pad, K - 1 - pad)] * 2,
        lhs_dilation=(stride, stride),
        dimension_numbers=("NHWC", "HWIO", "NHWC"))


def _ref_bn(x, g, b, m, v):
    return (x - m) * jax.lax.rsqrt(v + EPS) * g + b


def ref_forward(params, x_nchw):
    B, nz = x_nchw.shape[0], x_nchw.shape[1]
    z = x_nchw.reshape(B, nz)
    h = jnp.einsum("bi,iohw->bhwo", z, params["w1"])
    h = jnp.maximum(_ref_bn(h, params["g1"], params["b1"],
                            params["m1"], params["v1"]), 0.0)
    h = _ref_conv_transpose_nhwc(h, params["w2"], 2, 1)
    h = jnp.maximum(_ref_bn(h, params["g2"], params["b2"],
                            params["m2"], params["v2"]), 0.0)
    h = _ref_conv_transpose_nhwc(h, params["w3"], 2, 1)
    h = jnp.tanh(h)
    return jnp.transpose(h, (0, 3, 1, 2))


if __name__ == "__main__":
    key = jax.random.PRNGKey(0)
    pkey, xkey = jax.random.split(key)
    params = init_decoder_params(pkey, nz=32, ngf=16, nc=4)
    prep = prepare_params(params)                 # one-time weight packing
    x = jax.random.normal(xkey, (2, 32, 1, 1), dtype=jnp.float32)  # NCHW latent

    fwd = jax.jit(lambda xx: netg_forward(prep, xx))
    out = jax.block_until_ready(fwd(x))
    assert out.shape == (2, 4, 16, 16), out.shape

    ref = jax.block_until_ready(ref_forward(params, x))
    err = float(jnp.max(jnp.abs(out - ref)))
    assert err < 2e-2, f"max abs error vs reference: {err}"

    print("KERNEL_OK")
</pallas_src>

<mosaic_0001>
module attributes {stable_mosaic.version = 11 : i64} {
  func.func @_netg_kernel(%arg0: memref<2x32xf32, #tpu.memory_space<vmem>>, %arg1: memref<32x1024xbf16, #tpu.memory_space<vmem>>, %arg2: memref<1x1024xf32, #tpu.memory_space<vmem>>, %arg3: memref<768x512xbf16, #tpu.memory_space<vmem>>, %arg4: memref<1x512xf32, #tpu.memory_space<vmem>>, %arg5: memref<768x128xbf16, #tpu.memory_space<vmem>>, %arg6: memref<16x128xf32, #tpu.memory_space<vmem>>, %arg7: memref<12x256xbf16, #tpu.memory_space<vmem>>, %arg8: memref<20x256xbf16, #tpu.memory_space<vmem>>) attributes {dimension_semantics = [], scalar_prefetch = 0 : i64, scratch_operands = 2 : i64, tpu.core_type = #tpu.core_type<tc>} {
    %cst = arith.constant 0.000000e+00 : bf16
    %0 = vector.broadcast %cst : bf16 to vector<2x256xbf16>
    %c0 = arith.constant 0 : index
    %c0_0 = arith.constant 0 : index
    %1 = vector.load %arg7[%c0, %c0_0] : memref<12x256xbf16, #tpu.memory_space<vmem>>, vector<2x256xbf16>
    tpu.vector_store %arg7[%c0, %c0_0], %0 {strides = array<i32>} : memref<12x256xbf16, #tpu.memory_space<vmem>>, vector<2x256xbf16>,
    %c10 = arith.constant 10 : index
    %c0_1 = arith.constant 0 : index
    %2 = vector.load %arg7[%c10, %c0_1] : memref<12x256xbf16, #tpu.memory_space<vmem>>, vector<2x256xbf16>
    tpu.vector_store %arg7[%c10, %c0_1], %0 {strides = array<i32>} : memref<12x256xbf16, #tpu.memory_space<vmem>>, vector<2x256xbf16>,
    %cst_2 = arith.constant 0.000000e+00 : bf16
    %3 = vector.broadcast %cst_2 : bf16 to vector<2x256xbf16>
    %c0_3 = arith.constant 0 : index
    %c0_4 = arith.constant 0 : index
    %4 = vector.load %arg8[%c0_3, %c0_4] : memref<20x256xbf16, #tpu.memory_space<vmem>>, vector<2x256xbf16>
    tpu.vector_store %arg8[%c0_3, %c0_4], %3 {strides = array<i32>} : memref<20x256xbf16, #tpu.memory_space<vmem>>, vector<2x256xbf16>,
    %c18 = arith.constant 18 : index
    %c0_5 = arith.constant 0 : index
    %5 = vector.load %arg8[%c18, %c0_5] : memref<20x256xbf16, #tpu.memory_space<vmem>>, vector<2x256xbf16>
    tpu.vector_store %arg8[%c18, %c0_5], %3 {strides = array<i32>} : memref<20x256xbf16, #tpu.memory_space<vmem>>, vector<2x256xbf16>,
    %c0_6 = arith.constant 0 : index
    %c0_7 = arith.constant 0 : index
    %6 = vector.load %arg0[%c0_6, %c0_7] : memref<2x32xf32, #tpu.memory_space<vmem>>, vector<2x32xf32>
    %7 = arith.truncf %6 : vector<2x32xf32> to vector<2x32xbf16>
    %c0_8 = arith.constant 0 : index
    %c0_9 = arith.constant 0 : index
    %8 = vector.load %arg1[%c0_8, %c0_9] : memref<32x1024xbf16, #tpu.memory_space<vmem>>, vector<32x1024xbf16>
    %cst_10 = arith.constant dense<0.000000e+00> : vector<2x1024xf32>
    %9 = tpu.matmul %7, %8, %cst_10 {dimension_numbers = #tpu.dot_dimension_numbers<[1], [0], [0], [1], [0, 0, 1, 1], [], []>} : vector<2x32xbf16>, vector<32x1024xbf16>, vector<2x1024xf32> -> vector<2x1024xf32>
    %c0_11 = arith.constant 0 : index
    %c0_12 = arith.constant 0 : index
    %10 = vector.load %arg2[%c0_11, %c0_12] : memref<1x1024xf32, #tpu.memory_space<vmem>>, vector<1x1024xf32>
    %11 = vector.broadcast %10 : vector<1x1024xf32> to vector<2x1024xf32>
    %12 = arith.addf %9, %11 : vector<2x1024xf32>
    %cst_13 = arith.constant 0.000000e+00 : f32
    %13 = vector.broadcast %cst_13 : f32 to vector<2x1024xf32>
    %14 = arith.maximumf %12, %13 : vector<2x1024xf32>
    %15 = arith.truncf %14 : vector<2x1024xf32> to vector<2x1024xbf16>
    %16 = vector.extract_strided_slice %15 {offsets = [0, 0], sizes = [2, 256], strides = [1, 1]} : vector<2x1024xbf16> to vector<2x256xbf16>
    %c2 = arith.constant 2 : index
    %c0_14 = arith.constant 0 : index
    %17 = vector.load %arg7[%c2, %c0_14] : memref<12x256xbf16, #tpu.memory_space<vmem>>, vector<2x256xbf16>
    tpu.vector_store %arg7[%c2, %c0_14], %16 {strides = array<i32>} : memref<12x256xbf16, #tpu.memory_space<vmem>>, vector<2x256xbf16>,
    %18 = vector.extract_strided_slice %15 {offsets = [0, 256], sizes = [2, 256], strides = [1, 1]} : vector<2x1024xbf16> to vector<2x256xbf16>
    %c4 = arith.constant 4 : index
    %c0_15 = arith.constant 0 : index
    %19 = vector.load %arg7[%c4, %c0_15] : memref<12x256xbf16, #tpu.memory_space<vmem>>, vector<2x256xbf16>
    tpu.vector_store %arg7[%c4, %c0_15], %18 {strides = array<i32>} : memref<12x256xbf16, #tpu.memory_space<vmem>>, vector<2x256xbf16>,
    %20 = vector.extract_strided_slice %15 {offsets = [0, 512], sizes = [2, 256], strides = [1, 1]} : vector<2x1024xbf16> to vector<2x256xbf16>
    %c6 = arith.constant 6 : index
    %c0_16 = arith.constant 0 : index
    %21 = vector.load %arg7[%c6, %c0_16] : memref<12x256xbf16, #tpu.memory_space<vmem>>, vector<2x256xbf16>
    tpu.vector_store %arg7[%c6, %c0_16], %20 {strides = array<i32>} : memref<12x256xbf16, #tpu.memory_space<vmem>>, vector<2x256xbf16>,
    %22 = vector.extract_strided_slice %15 {offsets = [0, 768], sizes = [2, 256], strides = [1, 1]} : vector<2x1024xbf16> to vector<2x256xbf16>
    %c8 = arith.constant 8 : index
    %c0_17 = arith.constant 0 : index
    %23 = vector.load %arg7[%c8, %c0_17] : memref<12x256xbf16, #tpu.memory_space<vmem>>, vector<2x256xbf16>
    tpu.vector_store %arg7[%c8, %c0_17], %22 {strides = array<i32>} : memref<12x256xbf16, #tpu.memory_space<vmem>>, vector<2x256xbf16>,
    %c0_18 = arith.constant 0 : index
    %c0_19 = arith.constant 0 : index
    %24 = vector.load %arg4[%c0_18, %c0_19] : memref<1x512xf32, #tpu.memory_space<vmem>>, vector<1x512xf32>
    %c0_20 = arith.constant 0 : index
    %c0_21 = arith.constant 0 : index
    %25 = vector.load %arg7[%c0_20, %c0_21] : memref<12x256xbf16, #tpu.memory_space<vmem>>, vector<8x256xbf16>
    %c0_22 = arith.constant 0 : index
    %c0_23 = arith.constant 0 : index
    %26 = vector.load %arg3[%c0_22, %c0_23] : memref<768x512xbf16, #tpu.memory_space<vmem>>, vector<256x512xbf16>
    %cst_24 = arith.constant dense<0.000000e+00> : vector<8x512xf32>
    %27 = tpu.matmul %25, %26, %cst_24 {dimension_numbers = #tpu.dot_dimension_numbers<[1], [0], [0], [1], [0, 0, 1, 1], [], []>} : vector<8x256xbf16>, vector<256x512xbf16>, vector<8x512xf32> -> vector<8x512xf32>
    %28 = vector.broadcast %24 : vector<1x512xf32> to vector<8x512xf32>
    %29 = arith.addf %28, %27 : vector<8x512xf32>
    %c2_25 = arith.constant 2 : index
    %c0_26 = arith.constant 0 : index
    %30 = vector.load %arg7[%c2_25, %c0_26] : memref<12x256xbf16, #tpu.memory_space<vmem>>, vector<8x256xbf16>
    %c256 = arith.constant 256 : index
    %c0_27 = arith.constant 0 : index
    %31 = vector.load %arg3[%c256, %c0_27] : memref<768x512xbf16, #tpu.memory_space<vmem>>, vector<256x512xbf16>
    %cst_28 = arith.constant dense<0.000000e+00> : vector<8x512xf32>
    %32 = tpu.matmul %30, %31, %cst_28 {dimension_numbers = #tpu.dot_dimension_numbers<[1], [0], [0], [1], [0, 0, 1, 1], [], []>} : vector<8x256xbf16>, vector<256x512xbf16>, vector<8x512xf32> -> vector<8x512xf32>
    %33 = arith.addf %29, %32 : vector<8x512xf32>
    %c4_29 = arith.constant 4 : index
    %c0_30 = arith.constant 0 : index
    %34 = vector.load %arg7[%c4_29, %c0_30] : memref<12x256xbf16, #tpu.memory_space<vmem>>, vector<8x256xbf16>
    %c512 = arith.constant 512 : index
    %c0_31 = arith.constant 0 : index
    %35 = vector.load %arg3[%c512, %c0_31] : memref<768x512xbf16, #tpu.memory_space<vmem>>, vector<256x512xbf16>
    %cst_32 = arith.constant dense<0.000000e+00> : vector<8x512xf32>
    %36 = tpu.matmul %34, %35, %cst_32 {dimension_numbers = #tpu.dot_dimension_numbers<[1], [0], [0], [1], [0, 0, 1, 1], [], []>} : vector<8x256xbf16>, vector<256x512xbf16>, vector<8x512xf32> -> vector<8x512xf32>
    %37 = arith.addf %33, %36 : vector<8x512xf32>
    %cst_33 = arith.constant 0.000000e+00 : f32
    %38 = vector.broadcast %cst_33 : f32 to vector<8x512xf32>
    %39 = arith.maximumf %37, %38 : vector<8x512xf32>
    %40 = arith.truncf %39 : vector<8x512xf32> to vector<8x512xbf16>
    %41 = vector.extract_strided_slice %40 {offsets = [0, 0], sizes = [2, 256], strides = [1, 1]} : vector<8x512xbf16> to vector<2x256xbf16>
    %c2_34 = arith.constant 2 : index
    %c0_35 = arith.constant 0 : index
    %42 = vector.load %arg8[%c2_34, %c0_35] : memref<20x256xbf16, #tpu.memory_space<vmem>>, vector<2x256xbf16>
    tpu.vector_store %arg8[%c2_34, %c0_35], %41 {strides = array<i32>} : memref<20x256xbf16, #tpu.memory_space<vmem>>, vector<2x256xbf16>,
    %43 = vector.extract_strided_slice %40 {offsets = [0, 256], sizes = [2, 256], strides = [1, 1]} : vector<8x512xbf16> to vector<2x256xbf16>
    %c4_36 = arith.constant 4 : index
    %c0_37 = arith.constant 0 : index
    %44 = vector.load %arg8[%c4_36, %c0_37] : memref<20x256xbf16, #tpu.memory_space<vmem>>, vector<2x256xbf16>
    tpu.vector_store %arg8[%c4_36, %c0_37], %43 {strides = array<i32>} : memref<20x256xbf16, #tpu.memory_space<vmem>>, vector<2x256xbf16>,
    %45 = vector.extract_strided_slice %40 {offsets = [2, 0], sizes = [2, 256], strides = [1, 1]} : vector<8x512xbf16> to vector<2x256xbf16>
    %c6_38 = arith.constant 6 : index
    %c0_39 = arith.constant 0 : index
    %46 = vector.load %arg8[%c6_38, %c0_39] : memref<20x256xbf16, #tpu.memory_space<vmem>>, vector<2x256xbf16>
    tpu.vector_store %arg8[%c6_38, %c0_39], %45 {strides = array<i32>} : memref<20x256xbf16, #tpu.memory_space<vmem>>, vector<2x256xbf16>,
    %47 = vector.extract_strided_slice %40 {offsets = [2, 256], sizes = [2, 256], strides = [1, 1]} : vector<8x512xbf16> to vector<2x256xbf16>
    %c8_40 = arith.constant 8 : index
    %c0_41 = arith.constant 0 : index
    %48 = vector.load %arg8[%c8_40, %c0_41] : memref<20x256xbf16, #tpu.memory_space<vmem>>, vector<2x256xbf16>
    tpu.vector_store %arg8[%c8_40, %c0_41], %47 {strides = array<i32>} : memref<20x256xbf16, #tpu.memory_space<vmem>>, vector<2x256xbf16>,
    %49 = vector.extract_strided_slice %40 {offsets = [4, 0], sizes = [2, 256], strides = [1, 1]} : vector<8x512xbf16> to vector<2x256xbf16>
    %c10_42 = arith.constant 10 : index
    %c0_43 = arith.constant 0 : index
    %50 = vector.load %arg8[%c10_42, %c0_43] : memref<20x256xbf16, #tpu.memory_space<vmem>>, vector<2x256xbf16>
    tpu.vector_store %arg8[%c10_42, %c0_43], %49 {strides = array<i32>} : memref<20x256xbf16, #tpu.memory_space<vmem>>, vector<2x256xbf16>,
    %51 = vector.extract_strided_slice %40 {offsets = [4, 256], sizes = [2, 256], strides = [1, 1]} : vector<8x512xbf16> to vector<2x256xbf16>
    %c12 = arith.constant 12 : index
    %c0_44 = arith.constant 0 : index
    %52 = vector.load %arg8[%c12, %c0_44] : memref<20x256xbf16, #tpu.memory_space<vmem>>, vector<2x256xbf16>
    tpu.vector_store %arg8[%c12, %c0_44], %51 {strides = array<i32>} : memref<20x256xbf16, #tpu.memory_space<vmem>>, vector<2x256xbf16>,
    %53 = vector.extract_strided_slice %40 {offsets = [6, 0], sizes = [2, 256], strides = [1, 1]} : vector<8x512xbf16> to vector<2x256xbf16>
    %c14 = arith.constant 14 : index
    %c0_45 = arith.constant 0 : index
    %54 = vector.load %arg8[%c14, %c0_45] : memref<20x256xbf16, #tpu.memory_space<vmem>>, vector<2x256xbf16>
    tpu.vector_store %arg8[%c14, %c0_45], %53 {strides = array<i32>} : memref<20x256xbf16, #tpu.memory_space<vmem>>, vector<2x256xbf16>,
    %55 = vector.extract_strided_slice %40 {offsets = [6, 256], sizes = [2, 256], strides = [1, 1]} : vector<8x512xbf16> to vector<2x256xbf16>
    %c16 = arith.constant 16 : index
    %c0_46 = arith.constant 0 : index
    %56 = vector.load %arg8[%c16, %c0_46] : memref<20x256xbf16, #tpu.memory_space<vmem>>, vector<2x256xbf16>
    tpu.vector_store %arg8[%c16, %c0_46], %55 {strides = array<i32>} : memref<20x256xbf16, #tpu.memory_space<vmem>>, vector<2x256xbf16>,
    %c0_47 = arith.constant 0 : index
    %c0_48 = arith.constant 0 : index
    %57 = vector.load %arg8[%c0_47, %c0_48] : memref<20x256xbf16, #tpu.memory_space<vmem>>, vector<16x256xbf16>
    %c0_49 = arith.constant 0 : index
    %c0_50 = arith.constant 0 : index
    %58 = vector.load %arg5[%c0_49, %c0_50] : memref<768x128xbf16, #tpu.memory_space<vmem>>, vector<256x128xbf16>
    %cst_51 = arith.constant dense<0.000000e+00> : vector<16x128xf32>
    %59 = tpu.matmul %57, %58, %cst_51 {dimension_numbers = #tpu.dot_dimension_numbers<[1], [0], [0], [1], [0, 0, 1, 1], [], []>} : vector<16x256xbf16>, vector<256x128xbf16>, vector<16x128xf32> -> vector<16x128xf32>
    %c2_52 = arith.constant 2 : index
    %c0_53 = arith.constant 0 : index
    %60 = vector.load %arg8[%c2_52, %c0_53] : memref<20x256xbf16, #tpu.memory_space<vmem>>, vector<16x256xbf16>
    %c256_54 = arith.constant 256 : index
    %c0_55 = arith.constant 0 : index
    %61 = vector.load %arg5[%c256_54, %c0_55] : memref<768x128xbf16, #tpu.memory_space<vmem>>, vector<256x128xbf16>
    %cst_56 = arith.constant dense<0.000000e+00> : vector<16x128xf32>
    %62 = tpu.matmul %60, %61, %cst_56 {dimension_numbers = #tpu.dot_dimension_numbers<[1], [0], [0], [1], [0, 0, 1, 1], [], []>} : vector<16x256xbf16>, vector<256x128xbf16>, vector<16x128xf32> -> vector<16x128xf32>
    %63 = arith.addf %59, %62 : vector<16x128xf32>
    %c4_57 = arith.constant 4 : index
    %c0_58 = arith.constant 0 : index
    %64 = vector.load %arg8[%c4_57, %c0_58] : memref<20x256xbf16, #tpu.memory_space<vmem>>, vector<16x256xbf16>
    %c512_59 = arith.constant 512 : index
    %c0_60 = arith.constant 0 : index
    %65 = vector.load %arg5[%c512_59, %c0_60] : memref<768x128xbf16, #tpu.memory_space<vmem>>, vector<256x128xbf16>
    %cst_61 = arith.constant dense<0.000000e+00> : vector<16x128xf32>
    %66 = tpu.matmul %64, %65, %cst_61 {dimension_numbers = #tpu.dot_dimension_numbers<[1], [0], [0], [1], [0, 0, 1, 1], [], []>} : vector<16x256xbf16>, vector<256x128xbf16>, vector<16x128xf32> -> vector<16x128xf32>
    %67 = arith.addf %63, %66 : vector<16x128xf32>
    %68 = math.tanh %67 : vector<16x128xf32>
    %c0_62 = arith.constant 0 : index
    %c0_63 = arith.constant 0 : index
    %69 = vector.load %arg6[%c0_62, %c0_63] : memref<16x128xf32, #tpu.memory_space<vmem>>, vector<16x128xf32>
    tpu.vector_store %arg6[%c0_62, %c0_63], %68 {strides = array<i32>} : memref<16x128xf32, #tpu.memory_space<vmem>>, vector<16x128xf32>,
    return
  }
}

</mosaic_0001>

<llo_original>
// kernel: _lambda_.1
$region0: #{_lambda_.1}
  #allocation0 [shape = 'u32[]', space=smem, size = 0x4, offset = 0x4, fixed_abs, tag = 'smem constant byte address 0x4 - core index']
  #allocation1 [shape = 'u32[144,128]{1,0:T(1,128)}', space=vmem, size = 0x12000, scoped, tag = 'internal scratch']
  #allocation2 [shape = 'bf16[12,256]{1,0:T(8,128)(2,1)}', space=vmem, size = 0x2000, scoped, tag = 'scratch operand']
  #allocation3 [shape = 'bf16[20,256]{1,0:T(8,128)(2,1)}', space=vmem, size = 0x3000, scoped, tag = 'scratch operand']
  %s0 = inlined_call_operand.vmem [shape: f32[2,32], index: 0, kind: input, shape index: {}]
  %s1 = inlined_call_operand.vmem [shape: bf16[32,1024], index: 1, kind: input, shape index: {}]
  %s2 = inlined_call_operand.vmem [shape: f32[1,1024], index: 2, kind: input, shape index: {}]
  %s3 = inlined_call_operand.vmem [shape: bf16[768,512], index: 3, kind: input, shape index: {}]
  %s4 = inlined_call_operand.vmem [shape: f32[1,512], index: 4, kind: input, shape index: {}]
  %s5 = inlined_call_operand.vmem [shape: bf16[768,128], index: 5, kind: input, shape index: {}]
  %s6 = inlined_call_operand.vmem [shape: f32[16,128], index: 6, kind: output, shape index: {}]
  %s7 = sld [smem:[#allocation0]]
  $region34: #{_lambda_.1} parent=0
    _
  %s9 = ssub.s32 1, %s7
  %s10 = scalar_select 0, %s9, %s7
  // Predicated region
  $region2: #{_lambda_.1} parent=0 // pred_check
    _
  $region3: #{_lambda_.1} parent=0 // pred_check_branch
    %12 = sbr.rel (0) target = $region5
  $region4: #{_lambda_.1} parent=0 // pred_region
    _
  $region5: #{_lambda_.1} parent=0 // pred_fallthru
    _
  // Predicated region
  $region6: #{_lambda_.1} parent=0 // pred_check
    _
  $region7: #{_lambda_.1} parent=0 // pred_check_branch
    %14 = sbr.rel (0) target = $region9
  $region8: #{_lambda_.1} parent=0 // pred_region
    _
  $region9: #{_lambda_.1} parent=0 // pred_fallthru
    _
  // Predicated region
  $region10: #{_lambda_.1} parent=0 // pred_check
    _
  $region11: #{_lambda_.1} parent=0 // pred_check_branch
    %16 = sbr.rel (0) target = $region13
  $region12: #{_lambda_.1} parent=0 // pred_region
    _
  $region13: #{_lambda_.1} parent=0 // pred_fallthru
    _
  // Predicated region
  $region14: #{_lambda_.1} parent=0 // pred_check
    _
  $region15: #{_lambda_.1} parent=0 // pred_check_branch
    %18 = sbr.rel (0) target = $region17
  $region16: #{_lambda_.1} parent=0 // pred_region
    _
  $region17: #{_lambda_.1} parent=0 // pred_fallthru
    _
  // Predicated region
  $region18: #{_lambda_.1} parent=0 // pred_check
    _
  $region19: #{_lambda_.1} parent=0 // pred_check_branch
    %20 = sbr.rel (0) target = $region21
  $region20: #{_lambda_.1} parent=0 // pred_region
    _
  $region21: #{_lambda_.1} parent=0 // pred_fallthru
    _
  // Predicated region
  $region22: #{_lambda_.1} parent=0 // pred_check
    _
  $region23: #{_lambda_.1} parent=0 // pred_check_branch
    %22 = sbr.rel (0) target = $region25
  $region24: #{_lambda_.1} parent=0 // pred_region
    _
  $region25: #{_lambda_.1} parent=0 // pred_fallthru
    _
  %24 = vst [vmem:[#allocation2] sm:$0x11] 0
  %25 = vst [vmem:[#allocation2 + $0x8] sm:$0x22] 0
  %26 = vst [vmem:[#allocation3] sm:$0x11] 0
  %27 = vst [vmem:[#allocation3 + $0x10] sm:$0x22] 0
  %v28 = vld [vmem:[%s0] sm:$0x3]
  %v29 = vpack.c.bf16 %v28, %v28
  %v30 = vld [vmem:[%s1] sm:$0xff]
  %v31 = vld [vmem:[%s1 + $0x8] sm:$0xff]
  %v32 = vld [vmem:[%s1 + $0x10] sm:$0xff]
  %v33 = vld [vmem:[%s1 + $0x18] sm:$0xff]
  %v34 = vld [vmem:[%s1 + $0x20] sm:$0xff]
  %v35 = vld [vmem:[%s1 + $0x28] sm:$0xff]
  %v36 = vld [vmem:[%s1 + $0x30] sm:$0xff]
  %v37 = vld [vmem:[%s1 + $0x38] sm:$0xff]
  %v38 = vld [vmem:[%s1 + $0x40] sm:$0xff]
  %v39 = vld [vmem:[%s1 + $0x48] sm:$0xff]
  %v40 = vld [vmem:[%s1 + $0x50] sm:$0xff]
  %v41 = vld [vmem:[%s1 + $0x58] sm:$0xff]
  %v42 = vld [vmem:[%s1 + $0x60] sm:$0xff]
  %v43 = vld [vmem:[%s1 + $0x68] sm:$0xff]
  %v44 = vld [vmem:[%s1 + $0x70] sm:$0xff]
  %v45 = vld [vmem:[%s1 + $0x78] sm:$0xff]
  %v46 = vld [vmem:[%s2] sm:$0xff]
  %v48 = vlaneseq
  %v49 = vshrl.u32 %v48, 7
  %v50 = vsub.s32 0, %v49
  %v51 = vrot.slane %v46, %v50
  %v52 = vlaneseq
  %v53 = vshrl.u32 %v52, 7
  %v54 = vsub.s32 1, %v53
  %v55 = vrot.slane %v46, %v54
  %v56 = vlaneseq
  %v57 = vshrl.u32 %v56, 7
  %v58 = vsub.s32 2, %v57
  %v59 = vrot.slane %v46, %v58
  %v60 = vlaneseq
  %v61 = vshrl.u32 %v60, 7
  %v62 = vsub.s32 3, %v61
  %v63 = vrot.slane %v46, %v62
  %v64 = vlaneseq
  %v65 = vshrl.u32 %v64, 7
  %v66 = vsub.s32 4, %v65
  %v67 = vrot.slane %v46, %v66
  %v68 = vlaneseq
  %v69 = vshrl.u32 %v68, 7
  %v70 = vsub.s32 5, %v69
  %v71 = vrot.slane %v46, %v70
  %v72 = vlaneseq
  %v73 = vshrl.u32 %v72, 7
  %v74 = vsub.s32 6, %v73
  %v75 = vrot.slane %v46, %v74
  %v76 = vlaneseq
  %v77 = vshrl.u32 %v76, 7
  %v78 = vsub.s32 7, %v77
  %v79 = vrot.slane %v46, %v78
  %v104 = vunpack.c.l.b16 %v30
  %v105 = vunpack.c.h.b16 %v30
  %v106 = vunpack.c.l.b16 %v31
  %v107 = vunpack.c.h.b16 %v31
  %v108 = vunpack.c.l.b16 %v32
  %v109 = vunpack.c.h.b16 %v32
  %v110 = vunpack.c.l.b16 %v33
  %v111 = vunpack.c.h.b16 %v33
  %v112 = vunpack.c.l.b16 %v34
  %v113 = vunpack.c.h.b16 %v34
  %v114 = vunpack.c.l.b16 %v35
  %v115 = vunpack.c.h.b16 %v35
  %v116 = vunpack.c.l.b16 %v36
  %v117 = vunpack.c.h.b16 %v36
  %v118 = vunpack.c.l.b16 %v37
  %v119 = vunpack.c.h.b16 %v37
  %v120 = vunpack.c.l.b16 %v38
  %v121 = vunpack.c.h.b16 %v38
  %v122 = vunpack.c.l.b16 %v39
  %v123 = vunpack.c.h.b16 %v39
  %v124 = vunpack.c.l.b16 %v40
  %v125 = vunpack.c.h.b16 %v40
  %v126 = vunpack.c.l.b16 %v41
  %v127 = vunpack.c.h.b16 %v41
  %v128 = vunpack.c.l.b16 %v42
  %v129 = vunpack.c.h.b16 %v42
  %v130 = vunpack.c.l.b16 %v43
  %v131 = vunpack.c.h.b16 %v43
  %v132 = vunpack.c.l.b16 %v44
  %v133 = vunpack.c.h.b16 %v44
  %v134 = vunpack.c.l.b16 %v45
  %v135 = vunpack.c.h.b16 %v45
  %v136 = vpack.c.b16 %v112, %v104
  %v137 = vpack.c.b16 %v113, %v105
  %v138 = vpack.c.b16 %v114, %v106
  %v139 = vpack.c.b16 %v115, %v107
  %v140 = vpack.c.b16 %v116, %v108
  %v141 = vpack.c.b16 %v117, %v109
  %v142 = vpack.c.b16 %v118, %v110
  %v143 = vpack.c.b16 %v119, %v111
  %v144 = vpack.c.b16 %v128, %v120
  %v145 = vpack.c.b16 %v129, %v121
  %v146 = vpack.c.b16 %v130, %v122
  %v147 = vpack.c.b16 %v131, %v123
  %v148 = vpack.c.b16 %v132, %v124
  %v149 = vpack.c.b16 %v133, %v125
  %v150 = vpack.c.b16 %v134, %v126
  %v151 = vpack.c.b16 %v135, %v127
  %vm168 = vcmask 261120
  %v170 = vsel %vm168, %v29, 0
  %172 = vmatprep.subr.bf16.mxu0 %v137
  %173 = vmatpush1.bf16.msra.mxu0 %v136
  %174 = vmatprep.subr.bf16.mxu0 %v145
  %175 = vmatpush1.bf16.msra.mxu0 %v144
  %176 = vmatprep.subr.bf16.mxu0 0
  %177 = vmatpush1.bf16.msra.mxu0 0
  %178 = vmatprep.subr.bf16.mxu0 0
  %179 = vmatpush1.bf16.msra.mxu0 0
  %180 = vmatprep.subr.bf16.mxu0 0
  %181 = vmatpush1.bf16.msra.mxu0 0
  %182 = vmatprep.subr.bf16.mxu0 0
  %183 = vmatpush1.bf16.msra.mxu0 0
  %184 = vmatprep.subr.bf16.mxu0 0
  %185 = vmatpush1.bf16.msra.mxu0 0
  %186 = vmatprep.subr.bf16.mxu0 0
  %187 = vmatpush1.bf16.msra.mxu0 0
  %188 = vmatprep.subr.bf16.mxu0 0
  %189 = vmatpush1.bf16.msra.mxu0 0
  %190 = vmatprep.subr.bf16.mxu0 0
  %191 = vmatpush1.bf16.msra.mxu0 0
  %192 = vmatprep.subr.bf16.mxu0 0
  %193 = vmatpush1.bf16.msra.mxu0 0
  %194 = vmatprep.subr.bf16.mxu0 0
  %195 = vmatpush1.bf16.msra.mxu0 0
  %196 = vmatprep.subr.bf16.mxu0 0
  %197 = vmatpush1.bf16.msra.mxu0 0
  %198 = vmatprep.subr.bf16.mxu0 0
  %199 = vmatpush1.bf16.msra.mxu0 0
  %200 = vmatprep.subr.bf16.mxu0 0
  %201 = vmatpush1.bf16.msra.mxu0 0
  %202 = vmatprep.subr.bf16.mxu0 0
  %203 = vmatpush1.bf16.msra.mxu0 0
  %204 = vmatprep.mubr.bf16.mxu0 0
  %205 = vmatmul.mubr.bf16.gmra.mrb[0].mxu0 %v170
  %v206 = vpop.f32.mrb[0].mxu0
  %v207 = vadd.f32 %v51, %v206
  %v208 = vpop.f32.mrb[0].mxu0
  %v209 = vadd.f32 %v55, %v208
  %v210 = vpop.f32.mrb[0].mxu0
  %v211 = vpop.f32.mrb[0].mxu0
  %212 = vdwg.mxu0
  %213 = vmatprep.subr.bf16.mxu0 %v139
  %214 = vmatpush1.bf16.msra.mxu0 %v138
  %215 = vmatprep.subr.bf16.mxu0 %v147
  %216 = vmatpush1.bf16.msra.mxu0 %v146
  %217 = vmatprep.subr.bf16.mxu0 0
  %218 = vmatpush1.bf16.msra.mxu0 0
  %219 = vmatprep.subr.bf16.mxu0 0
  %220 = vmatpush1.bf16.msra.mxu0 0
  %221 = vmatprep.subr.bf16.mxu0 0
  %222 = vmatpush1.bf16.msra.mxu0 0
  %223 = vmatprep.subr.bf16.mxu0 0
  %224 = vmatpush1.bf16.msra.mxu0 0
  %225 = vmatprep.subr.bf16.mxu0 0
  %226 = vmatpush1.bf16.msra.mxu0 0
  %227 = vmatprep.subr.bf16.mxu0 0
  %228 = vmatpush1.bf16.msra.mxu0 0
  %229 = vmatprep.subr.bf16.mxu0 0
  %230 = vmatpush1.bf16.msra.mxu0 0
  %231 = vmatprep.subr.bf16.mxu0 0
  %232 = vmatpush1.bf16.msra.mxu0 0
  %233 = vmatprep.subr.bf16.mxu0 0
  %234 = vmatpush1.bf16.msra.mxu0 0
  %235 = vmatprep.subr.bf16.mxu0 0
  %236 = vmatpush1.bf16.msra.mxu0 0
  %237 = vmatprep.subr.bf16.mxu0 0
  %238 = vmatpush1.bf16.msra.mxu0 0
  %239 = vmatprep.subr.bf16.mxu0 0
  %240 = vmatpush1.bf16.msra.mxu0 0
  %241 = vmatprep.subr.bf16.mxu0 0
  %242 = vmatpush1.bf16.msra.mxu0 0
  %243 = vmatprep.subr.bf16.mxu0 0
  %244 = vmatpush1.bf16.msra.mxu0 0
  %245 = vmatprep.mubr.bf16.mxu0 0
  %246 = vmatmul.mubr.bf16.gmra.mrb[0].mxu0 %v170
  %v247 = vpop.f32.mrb[0].mxu0
  %v248 = vadd.f32 %v59, %v247
  %v249 = vpop.f32.mrb[0].mxu0
  %v250 = vadd.f32 %v63, %v249
  %v251 = vpop.f32.mrb[0].mxu0
  %v252 = vpop.f32.mrb[0].mxu0
  %253 = vdwg.mxu0
  %254 = vmatprep.subr.bf16.mxu0 %v141
  %255 = vmatpush1.bf16.msra.mxu0 %v140
  %256 = vmatprep.subr.bf16.mxu0 %v149
  %257 = vmatpush1.bf16.msra.mxu0 %v148
  %258 = vmatprep.subr.bf16.mxu0 0
  %259 = vmatpush1.bf16.msra.mxu0 0
  %260 = vmatprep.subr.bf16.mxu0 0
  %261 = vmatpush1.bf16.msra.mxu0 0
  %262 = vmatprep.subr.bf16.mxu0 0
  %263 = vmatpush1.bf16.msra.mxu0 0
  %264 = vmatprep.subr.bf16.mxu0 0
  %265 = vmatpush1.bf16.msra.mxu0 0
  %266 = vmatprep.subr.bf16.mxu0 0
  %267 = vmatpush1.bf16.msra.mxu0 0
  %268 = vmatprep.subr.bf16.mxu0 0
  %269 = vmatpush1.bf16.msra.mxu0 0
  %270 = vmatprep.subr.bf16.mxu0 0
  %271 = vmatpush1.bf16.msra.mxu0 0
  %272 = vmatprep.subr.bf16.mxu0 0
  %273 = vmatpush1.bf16.msra.mxu0 0
  %274 = vmatprep.subr.bf16.mxu0 0
  %275 = vmatpush1.bf16.msra.mxu0 0
  %276 = vmatprep.subr.bf16.mxu0 0
  %277 = vmatpush1.bf16.msra.mxu0 0
  %278 = vmatprep.subr.bf16.mxu0 0
  %279 = vmatpush1.bf16.msra.mxu0 0
  %280 = vmatprep.subr.bf16.mxu0 0
  %281 = vmatpush1.bf16.msra.mxu0 0
  %282 = vmatprep.subr.bf16.mxu0 0
  %283 = vmatpush1.bf16.msra.mxu0 0
  %284 = vmatprep.subr.bf16.mxu0 0
  %285 = vmatpush1.bf16.msra.mxu0 0
  %286 = vmatprep.mubr.bf16.mxu0 0
  %287 = vmatmul.mubr.bf16.gmra.mrb[0].mxu0 %v170
  %v288 = vpop.f32.mrb[0].mxu0
  %v289 = vadd.f32 %v67, %v288
  %v290 = vpop.f32.mrb[0].mxu0
  %v291 = vadd.f32 %v71, %v290
  %v292 = vpop.f32.mrb[0].mxu0
  %v293 = vpop.f32.mrb[0].mxu0
  %294 = vdwg.mxu0
  %295 = vmatprep.subr.bf16.mxu0 %v143
  %296 = vmatpush1.bf16.msra.mxu0 %v142
  %297 = vmatprep.subr.bf16.mxu0 %v151
  %298 = vmatpush1.bf16.msra.mxu0 %v150
  %299 = vmatprep.subr.bf16.mxu0 0
  %300 = vmatpush1.bf16.msra.mxu0 0
  %301 = vmatprep.subr.bf16.mxu0 0
  %302 = vmatpush1.bf16.msra.mxu0 0
  %303 = vmatprep.subr.bf16.mxu0 0
  %304 = vmatpush1.bf16.msra.mxu0 0
  %305 = vmatprep.subr.bf16.mxu0 0
  %306 = vmatpush1.bf16.msra.mxu0 0
  %307 = vmatprep.subr.bf16.mxu0 0
  %308 = vmatpush1.bf16.msra.mxu0 0
  %309 = vmatprep.subr.bf16.mxu0 0
  %310 = vmatpush1.bf16.msra.mxu0 0
  %311 = vmatprep.subr.bf16.mxu0 0
  %312 = vmatpush1.bf16.msra.mxu0 0
  %313 = vmatprep.subr.bf16.mxu0 0
  %314 = vmatpush1.bf16.msra.mxu0 0
  %315 = vmatprep.subr.bf16.mxu0 0
  %316 = vmatpush1.bf16.msra.mxu0 0
  %317 = vmatprep.subr.bf16.mxu0 0
  %318 = vmatpush1.bf16.msra.mxu0 0
  %319 = vmatprep.subr.bf16.mxu0 0
  %320 = vmatpush1.bf16.msra.mxu0 0
  %321 = vmatprep.subr.bf16.mxu0 0
  %322 = vmatpush1.bf16.msra.mxu0 0
  %323 = vmatprep.subr.bf16.mxu0 0
  %324 = vmatpush1.bf16.msra.mxu0 0
  %325 = vmatprep.subr.bf16.mxu0 0
  %326 = vmatpush1.bf16.msra.mxu0 0
  %327 = vmatprep.mubr.bf16.mxu0 0
  %328 = vmatmul.mubr.bf16.gmra.mrb[0].mxu0 %v170
  %v329 = vpop.f32.mrb[0].mxu0
  %v330 = vadd.f32 %v75, %v329
  %v331 = vpop.f32.mrb[0].mxu0
  %v332 = vadd.f32 %v79, %v331
  %v333 = vpop.f32.mrb[0].mxu0
  %v334 = vpop.f32.mrb[0].mxu0
  %335 = vdwg.mxu0
  %v336 = vmax.f32 %v207, 0.0
  %v337 = vmax.f32 %v209, 0.0
  %v338 = vmax.f32 %v248, 0.0
  %v339 = vmax.f32 %v250, 0.0
  %v340 = vmax.f32 %v289, 0.0
  %v341 = vmax.f32 %v291, 0.0
  %v342 = vmax.f32 %v330, 0.0
  %v343 = vmax.f32 %v332, 0.0
  %v344 = vpack.c.bf16 %v336, %v336
  %v345 = vpack.c.bf16 %v337, %v337
  %v346 = vpack.c.bf16 %v338, %v338
  %v347 = vpack.c.bf16 %v339, %v339
  %v348 = vpack.c.bf16 %v340, %v340
  %v349 = vpack.c.bf16 %v341, %v341
  %v350 = vpack.c.bf16 %v342, %v342
  %v351 = vpack.c.bf16 %v343, %v343
  %v354 = vunpack.c.l.b16 %v344
  %v355 = vunpack.c.l.b16 %v345
  %v356 = vpack.c.b16 %v355, %v354
  %v357 = vrot.slane %v356, 7
  %359 = vst [vmem:[#allocation2] sm:$0x22] %v357
  %v362 = vunpack.c.l.b16 %v346
  %v363 = vunpack.c.l.b16 %v347
  %v364 = vpack.c.b16 %v363, %v362
  %v365 = vrot.slane %v364, 6
  %367 = vst [vmem:[#allocation2] sm:$0x44] %v365
  %v370 = vunpack.c.l.b16 %v348
  %v371 = vunpack.c.l.b16 %v349
  %v372 = vpack.c.b16 %v371, %v370
  %v373 = vrot.slane %v372, 5
  %375 = vst [vmem:[#allocation2] sm:$0x88] %v373
  %v378 = vunpack.c.l.b16 %v350
  %v379 = vunpack.c.l.b16 %v351
  %v380 = vpack.c.b16 %v379, %v378
  %382 = vst [vmem:[#allocation2 + $0x8] sm:$0x11] %v380
  %v383 = vld [vmem:[%s4] sm:$0xf]
  %v384 = vld [vmem:[#allocation2] sm:$0xff]
  %v385 = vld [vmem:[%s3] sm:$0xff]
  %v386 = vld [vmem:[%s3 + $0x8] sm:$0xff]
  %v387 = vld [vmem:[%s3 + $0x10] sm:$0xff]
  %v388 = vld [vmem:[%s3 + $0x18] sm:$0xff]
  %v389 = vld [vmem:[%s3 + $0x20] sm:$0xff]
  %v390 = vld [vmem:[%s3 + $0x28] sm:$0xff]
  %v391 = vld [vmem:[%s3 + $0x30] sm:$0xff]
  %v392 = vld [vmem:[%s3 + $0x38] sm:$0xff]
  %v393 = vld [vmem:[%s3 + $0x40] sm:$0xff]
  %v394 = vld [vmem:[%s3 + $0x48] sm:$0xff]
  %v395 = vld [vmem:[%s3 + $0x50] sm:$0xff]
  %v396 = vld [vmem:[%s3 + $0x58] sm:$0xff]
  %v397 = vld [vmem:[%s3 + $0x60] sm:$0xff]
  %v398 = vld [vmem:[%s3 + $0x68] sm:$0xff]
  %v399 = vld [vmem:[%s3 + $0x70] sm:$0xff]
  %v400 = vld [vmem:[%s3 + $0x78] sm:$0xff]
  %v401 = vld [vmem:[%s3 + $0x80] sm:$0xff]
  %v402 = vld [vmem:[%s3 + $0x88] sm:$0xff]
  %v403 = vld [vmem:[%s3 + $0x90] sm:$0xff]
  %v404 = vld [vmem:[%s3 + $0x98] sm:$0xff]
  %v405 = vld [vmem:[%s3 + $0xa0] sm:$0xff]
  %v406 = vld [vmem:[%s3 + $0xa8] sm:$0xff]
  %v407 = vld [vmem:[%s3 + $0xb0] sm:$0xff]
  %v408 = vld [vmem:[%s3 + $0xb8] sm:$0xff]
  %v409 = vld [vmem:[%s3 + $0xc0] sm:$0xff]
  %v410 = vld [vmem:[%s3 + $0xc8] sm:$0xff]
  %v411 = vld [vmem:[%s3 + $0xd0] sm:$0xff]
  %v412 = vld [vmem:[%s3 + $0xd8] sm:$0xff]
  %v413 = vld [vmem:[%s3 + $0xe0] sm:$0xff]
  %v414 = vld [vmem:[%s3 + $0xe8] sm:$0xff]
  %v415 = vld [vmem:[%s3 + $0xf0] sm:$0xff]
  %v416 = vld [vmem:[%s3 + $0xf8] sm:$0xff]
  %v417 = vld [vmem:[%s3 + $0x100] sm:$0xff]
  %v418 = vld [vmem:[%s3 + $0x108] sm:$0xff]
  %v419 = vld [vmem:[%s3 + $0x110] sm:$0xff]
  %v420 = vld [vmem:[%s3 + $0x118] sm:$0xff]
  %v421 = vld [vmem:[%s3 + $0x120] sm:$0xff]
  %v422 = vld [vmem:[%s3 + $0x128] sm:$0xff]
  %v423 = vld [vmem:[%s3 + $0x130] sm:$0xff]
  %v424 = vld [vmem:[%s3 + $0x138] sm:$0xff]
  %v425 = vld [vmem:[%s3 + $0x140] sm:$0xff]
  %v426 = vld [vmem:[%s3 + $0x148] sm:$0xff]
  %v427 = vld [vmem:[%s3 + $0x150] sm:$0xff]
  %v428 = vld [vmem:[%s3 + $0x158] sm:$0xff]
  %v429 = vld [vmem:[%s3 + $0x160] sm:$0xff]
  %v430 = vld [vmem:[%s3 + $0x168] sm:$0xff]
  %v431 = vld [vmem:[%s3 + $0x170] sm:$0xff]
  %v432 = vld [vmem:[%s3 + $0x178] sm:$0xff]
  %v433 = vld [vmem:[%s3 + $0x180] sm:$0xff]
  %v434 = vld [vmem:[%s3 + $0x188] sm:$0xff]
  %v435 = vld [vmem:[%s3 + $0x190] sm:$0xff]
  %v436 = vld [vmem:[%s3 + $0x198] sm:$0xff]
  %v437 = vld [vmem:[%s3 + $0x1a0] sm:$0xff]
  %v438 = vld [vmem:[%s3 + $0x1a8] sm:$0xff]
  %v439 = vld [vmem:[%s3 + $0x1b0] sm:$0xff]
  %v440 = vld [vmem:[%s3 + $0x1b8] sm:$0xff]
  %v441 = vld [vmem:[%s3 + $0x1c0] sm:$0xff]
  %v442 = vld [vmem:[%s3 + $0x1c8] sm:$0xff]
  %v443 = vld [vmem:[%s3 + $0x1d0] sm:$0xff]
  %v444 = vld [vmem:[%s3 + $0x1d8] sm:$0xff]
  %v445 = vld [vmem:[%s3 + $0x1e0] sm:$0xff]
  %v446 = vld [vmem:[%s3 + $0x1e8] sm:$0xff]
  %v447 = vld [vmem:[%s3 + $0x1f0] sm:$0xff]
  %v448 = vld [vmem:[%s3 + $0x1f8] sm:$0xff]
  %v450 = vunpack.c.l.b16 %v384
  %v451 = vunpack.c.h.b16 %v384
  %v452 = vpack.c.b16 %v450, %v450
  %v453 = vpack.c.b16 %v451, %v451
  %v520 = vunpack.c.l.b16 %v385
  %v521 = vunpack.c.h.b16 %v385
  %v522 = vunpack.c.l.b16 %v386
  %v523 = vunpack.c.h.b16 %v386
  %v524 = vunpack.c.l.b16 %v387
  %v525 = vunpack.c.h.b16 %v387
  %v526 = vunpack.c.l.b16 %v388
  %v527 = vunpack.c.h.b16 %v388
  %v528 = vunpack.c.l.b16 %v389
  %v529 = vunpack.c.h.b16 %v389
  %v530 = vunpack.c.l.b16 %v390
  %v531 = vunpack.c.h.b16 %v390
  %v532 = vunpack.c.l.b16 %v391
  %v533 = vunpack.c.h.b16 %v391
  %v534 = vunpack.c.l.b16 %v392
  %v535 = vunpack.c.h.b16 %v392
  %v536 = vunpack.c.l.b16 %v393
  %v537 = vunpack.c.h.b16 %v393
  %v538 = vunpack.c.l.b16 %v394
  %v539 = vunpack.c.h.b16 %v394
  %v540 = vunpack.c.l.b16 %v395
  %v541 = vunpack.c.h.b16 %v395
  %v542 = vunpack.c.l.b16 %v396
  %v543 = vunpack.c.h.b16 %v396
  %v544 = vunpack.c.l.b16 %v397
  %v545 = vunpack.c.h.b16 %v397
  %v546 = vunpack.c.l.b16 %v398
  %v547 = vunpack.c.h.b16 %v398
  %v548 = vunpack.c.l.b16 %v399
  %v549 = vunpack.c.h.b16 %v399
  %v550 = vunpack.c.l.b16 %v400
  %v551 = vunpack.c.h.b16 %v400
  %v552 = vunpack.c.l.b16 %v401
  %v553 = vunpack.c.h.b16 %v401
  %v554 = vunpack.c.l.b16 %v402
  %v555 = vunpack.c.h.b16 %v402
  %v556 = vunpack.c.l.b16 %v403
  %v557 = vunpack.c.h.b16 %v403
  %v558 = vunpack.c.l.b16 %v404
  %v559 = vunpack.c.h.b16 %v404
  %v560 = vunpack.c.l.b16 %v405
  %v561 = vunpack.c.h.b16 %v405
  %v562 = vunpack.c.l.b16 %v406
  %v563 = vunpack.c.h.b16 %v406
  %v564 = vunpack.c.l.b16 %v407
  %v565 = vunpack.c.h.b16 %v407
  %v566 = vunpack.c.l.b16 %v408
  %v567 = vunpack.c.h.b16 %v408
  %v568 = vunpack.c.l.b16 %v409
  %v569 = vunpack.c.h.b16 %v409
  %v570 = vunpack.c.l.b16 %v410
  %v571 = vunpack.c.h.b16 %v410
  %v572 = vunpack.c.l.b16 %v411
  %v573 = vunpack.c.h.b16 %v411
  %v574 = vunpack.c.l.b16 %v412
  %v575 = vunpack.c.h.b16 %v412
  %v576 = vunpack.c.l.b16 %v413
  %v577 = vunpack.c.h.b16 %v413
  %v578 = vunpack.c.l.b16 %v414
  %v579 = vunpack.c.h.b16 %v414
  %v580 = vunpack.c.l.b16 %v415
  %v581 = vunpack.c.h.b16 %v415
  %v582 = vunpack.c.l.b16 %v416
  %v583 = vunpack.c.h.b16 %v416
  %v584 = vunpack.c.l.b16 %v417
  %v585 = vunpack.c.h.b16 %v417
  %v586 = vunpack.c.l.b16 %v418
  %v587 = vunpack.c.h.b16 %v418
  %v588 = vunpack.c.l.b16 %v419
  %v589 = vunpack.c.h.b16 %v419
  %v590 = vunpack.c.l.b16 %v420
  %v591 = vunpack.c.h.b16 %v420
  %v592 = vunpack.c.l.b16 %v421
  %v593 = vunpack.c.h.b16 %v421
  %v594 = vunpack.c.l.b16 %v422
  %v595 = vunpack.c.h.b16 %v422
  %v596 = vunpack.c.l.b16 %v423
  %v597 = vunpack.c.h.b16 %v423
  %v598 = vunpack.c.l.b16 %v424
  %v599 = vunpack.c.h.b16 %v424
  %v600 = vunpack.c.l.b16 %v425
  %v601 = vunpack.c.h.b16 %v425
  %v602 = vunpack.c.l.b16 %v426
  %v603 = vunpack.c.h.b16 %v426
  %v604 = vunpack.c.l.b16 %v427
  %v605 = vunpack.c.h.b16 %v427
  %v606 = vunpack.c.l.b16 %v428
  %v607 = vunpack.c.h.b16 %v428
  %v608 = vunpack.c.l.b16 %v429
  %v609 = vunpack.c.h.b16 %v429
  %v610 = vunpack.c.l.b16 %v430
  %v611 = vunpack.c.h.b16 %v430
  %v612 = vunpack.c.l.b16 %v431
  %v613 = vunpack.c.h.b16 %v431
  %v614 = vunpack.c.l.b16 %v432
  %v615 = vunpack.c.h.b16 %v432
  %v616 = vunpack.c.l.b16 %v433
  %v617 = vunpack.c.h.b16 %v433
  %v618 = vunpack.c.l.b16 %v434
  %v619 = vunpack.c.h.b16 %v434
  %v620 = vunpack.c.l.b16 %v435
  %v621 = vunpack.c.h.b16 %v435
  %v622 = vunpack.c.l.b16 %v436
  %v623 = vunpack.c.h.b16 %v436
  %v624 = vunpack.c.l.b16 %v437
  %v625 = vunpack.c.h.b16 %v437
  %v626 = vunpack.c.l.b16 %v438
  %v627 = vunpack.c.h.b16 %v438
  %v628 = vunpack.c.l.b16 %v439
  %v629 = vunpack.c.h.b16 %v439
  %v630 = vunpack.c.l.b16 %v440
  %v631 = vunpack.c.h.b16 %v440
  %v632 = vunpack.c.l.b16 %v441
  %v633 = vunpack.c.h.b16 %v441
  %v634 = vunpack.c.l.b16 %v442
  %v635 = vunpack.c.h.b16 %v442
  %v636 = vunpack.c.l.b16 %v443
  %v637 = vunpack.c.h.b16 %v443
  %v638 = vunpack.c.l.b16 %v444
  %v639 = vunpack.c.h.b16 %v444
  %v640 = vunpack.c.l.b16 %v445
  %v641 = vunpack.c.h.b16 %v445
  %v642 = vunpack.c.l.b16 %v446
  %v643 = vunpack.c.h.b16 %v446
  %v644 = vunpack.c.l.b16 %v447
  %v645 = vunpack.c.h.b16 %v447
  %v646 = vunpack.c.l.b16 %v448
  %v647 = vunpack.c.h.b16 %v448
  %v648 = vpack.c.b16 %v524, %v520
  %v649 = vpack.c.b16 %v525, %v521
  %v650 = vpack.c.b16 %v526, %v522
  %v651 = vpack.c.b16 %v527, %v523
  %v652 = vpack.c.b16 %v532, %v528
  %v653 = vpack.c.b16 %v533, %v529
  %v654 = vpack.c.b16 %v534, %v530
  %v655 = vpack.c.b16 %v535, %v531
  %v656 = vpack.c.b16 %v540, %v536
  %v657 = vpack.c.b16 %v541, %v537
  %v658 = vpack.c.b16 %v542, %v538
  %v659 = vpack.c.b16 %v543, %v539
  %v660 = vpack.c.b16 %v548, %v544
  %v661 = vpack.c.b16 %v549, %v545
  %v662 = vpack.c.b16 %v550, %v546
  %v663 = vpack.c.b16 %v551, %v547
  %v664 = vpack.c.b16 %v556, %v552
  %v665 = vpack.c.b16 %v557, %v553
  %v666 = vpack.c.b16 %v558, %v554
  %v667 = vpack.c.b16 %v559, %v555
  %v668 = vpack.c.b16 %v564, %v560
  %v669 = vpack.c.b16 %v565, %v561
  %v670 = vpack.c.b16 %v566, %v562
  %v671 = vpack.c.b16 %v567, %v563
  %v672 = vpack.c.b16 %v572, %v568
  %v673 = vpack.c.b16 %v573, %v569
  %v674 = vpack.c.b16 %v574, %v570
  %v675 = vpack.c.b16 %v575, %v571
  %v676 = vpack.c.b16 %v580, %v576
  %v677 = vpack.c.b16 %v581, %v577
  %v678 = vpack.c.b16 %v582, %v578
  %v679 = vpack.c.b16 %v583, %v579
  %v680 = vpack.c.b16 %v588, %v584
  %v681 = vpack.c.b16 %v589, %v585
  %v682 = vpack.c.b16 %v590, %v586
  %v683 = vpack.c.b16 %v591, %v587
  %v684 = vpack.c.b16 %v596, %v592
  %v685 = vpack.c.b16 %v597, %v593
  %v686 = vpack.c.b16 %v598, %v594
  %v687 = vpack.c.b16 %v599, %v595
  %v688 = vpack.c.b16 %v604, %v600
  %v689 = vpack.c.b16 %v605, %v601
  %v690 = vpack.c.b16 %v606, %v602
  %v691 = vpack.c.b16 %v607, %v603
  %v692 = vpack.c.b16 %v612, %v608
  %v693 = vpack.c.b16 %v613, %v609
  %v694 = vpack.c.b16 %v614, %v610
  %v695 = vpack.c.b16 %v615, %v611
  %v696 = vpack.c.b16 %v620, %v616
  %v697 = vpack.c.b16 %v621, %v617
  %v698 = vpack.c.b16 %v622, %v618
  %v699 = vpack.c.b16 %v623, %v619
  %v700 = vpack.c.b16 %v628, %v624
  %v701 = vpack.c.b16 %v629, %v625
  %v702 = vpack.c.b16 %v630, %v626
  %v703 = vpack.c.b16 %v631, %v627
  %v704 = vpack.c.b16 %v636, %v632
  %v705 = vpack.c.b16 %v637, %v633
  %v706 = vpack.c.b16 %v638, %v634
  %v707 = vpack.c.b16 %v639, %v635
  %v708 = vpack.c.b16 %v644, %v640
  %v709 = vpack.c.b16 %v645, %v641
  %v710 = vpack.c.b16 %v646, %v642
  %v711 = vpack.c.b16 %v647, %v643
  %776 = vmatprep.subr.bf16.mxu0 %v649
  %777 = vmatpush1.bf16.msra.mxu0 %v648
  %778 = vmatprep.subr.bf16.mxu0 %v653
  %779 = vmatpush1.bf16.msra.mxu0 %v652
  %780 = vmatprep.subr.bf16.mxu0 %v657
  %781 = vmatpush1.bf16.msra.mxu0 %v656
  %782 = vmatprep.subr.bf16.mxu0 %v661
  %783 = vmatpush1.bf16.msra.mxu0 %v660
  %784 = vmatprep.subr.bf16.mxu0 %v665
  %785 = vmatpush1.bf16.msra.mxu0 %v664
  %786 = vmatprep.subr.bf16.mxu0 %v669
  %787 = vmatpush1.bf16.msra.mxu0 %v668
  %788 = vmatprep.subr.bf16.mxu0 %v673
  %789 = vmatpush1.bf16.msra.mxu0 %v672
  %790 = vmatprep.subr.bf16.mxu0 %v677
  %791 = vmatpush1.bf16.msra.mxu0 %v676
  %792 = vmatprep.subr.bf16.mxu0 %v681
  %793 = vmatpush1.bf16.msra.mxu0 %v680
  %794 = vmatprep.subr.bf16.mxu0 %v685
  %795 = vmatpush1.bf16.msra.mxu0 %v684
  %796 = vmatprep.subr.bf16.mxu0 %v689
  %797 = vmatpush1.bf16.msra.mxu0 %v688
  %798 = vmatprep.subr.bf16.mxu0 %v693
  %799 = vmatpush1.bf16.msra.mxu0 %v692
  %800 = vmatprep.subr.bf16.mxu0 %v697
  %801 = vmatpush1.bf16.msra.mxu0 %v696
  %802 = vmatprep.subr.bf16.mxu0 %v701
  %803 = vmatpush1.bf16.msra.mxu0 %v700
  %804 = vmatprep.subr.bf16.mxu0 %v705
  %805 = vmatpush1.bf16.msra.mxu0 %v704
  %806 = vmatprep.subr.bf16.mxu0 %v709
  %807 = vmatpush1.bf16.msra.mxu0 %v708
  %808 = vmatprep.mubr.bf16.mxu0 %v453
  %809 = vmatmul.mubr.bf16.gmra.mrb[0].mxu0 %v452
  %v810 = vpop.f32.mrb[0].mxu0
  %v811 = vadd.f32 0.0, %v810
  %v812 = vpop.f32.mrb[0].mxu0
  %v813 = vadd.f32 0.0, %v812
  %v814 = vpop.f32.mrb[0].mxu0
  %v815 = vpop.f32.mrb[0].mxu0
  %816 = vdwg.mxu0
  %817 = vmatprep.subr.bf16.mxu0 %v651
  %818 = vmatpush1.bf16.msra.mxu0 %v650
  %819 = vmatprep.subr.bf16.mxu0 %v655
  %820 = vmatpush1.bf16.msra.mxu0 %v654
  %821 = vmatprep.subr.bf16.mxu0 %v659
  %822 = vmatpush1.bf16.msra.mxu0 %v658
  %823 = vmatprep.subr.bf16.mxu0 %v663
  %824 = vmatpush1.bf16.msra.mxu0 %v662
  %825 = vmatprep.subr.bf16.mxu0 %v667
  %826 = vmatpush1.bf16.msra.mxu0 %v666
  %827 = vmatprep.subr.bf16.mxu0 %v671
  %828 = vmatpush1.bf16.msra.mxu0 %v670
  %829 = vmatprep.subr.bf16.mxu0 %v675
  %830 = vmatpush1.bf16.msra.mxu0 %v674
  %831 = vmatprep.subr.bf16.mxu0 %v679
  %832 = vmatpush1.bf16.msra.mxu0 %v678
  %833 = vmatprep.subr.bf16.mxu0 %v683
  %834 = vmatpush1.bf16.msra.mxu0 %v682
  %835 = vmatprep.subr.bf16.mxu0 %v687
  %836 = vmatpush1.bf16.msra.mxu0 %v686
  %837 = vmatprep.subr.bf16.mxu0 %v691
  %838 = vmatpush1.bf16.msra.mxu0 %v690
  %839 = vmatprep.subr.bf16.mxu0 %v695
  %840 = vmatpush1.bf16.msra.mxu0 %v694
  %841 = vmatprep.subr.bf16.mxu0 %v699
  %842 = vmatpush1.bf16.msra.mxu0 %v698
  %843 = vmatprep.subr.bf16.mxu0 %v703
  %844 = vmatpush1.bf16.msra.mxu0 %v702
  %845 = vmatprep.subr.bf16.mxu0 %v707
  %846 = vmatpush1.bf16.msra.mxu0 %v706
  %847 = vmatprep.subr.bf16.mxu0 %v711
  %848 = vmatpush1.bf16.msra.mxu0 %v710
  %849 = vmatprep.mubr.bf16.mxu0 %v453
  %850 = vmatmul.mubr.bf16.gmra.mrb[0].mxu0 %v452
  %v851 = vpop.f32.mrb[0].mxu0
  %v852 = vadd.f32 0.0, %v851
  %v853 = vpop.f32.mrb[0].mxu0
  %v854 = vadd.f32 0.0, %v853
  %v855 = vpop.f32.mrb[0].mxu0
  %v856 = vpop.f32.mrb[0].mxu0
  %857 = vdwg.mxu0
  %v859 = vlaneseq
  %v860 = vshrl.u32 %v859, 7
  %v861 = vsub.s32 0, %v860
  %v862 = vrot.slane %v383, %v861
  %v863 = vlaneseq
  %v864 = vshrl.u32 %v863, 7
  %v865 = vsub.s32 1, %v864
  %v866 = vrot.slane %v383, %v865
  %v867 = vlaneseq
  %v868 = vshrl.u32 %v867, 7
  %v869 = vsub.s32 2, %v868
  %v870 = vrot.slane %v383, %v869
  %v871 = vlaneseq
  %v872 = vshrl.u32 %v871, 7
  %v873 = vsub.s32 3, %v872
  %v874 = vrot.slane %v383, %v873
  %v879 = vadd.f32 %v862, %v811
  %v880 = vadd.f32 %v866, %v813
  %v881 = vadd.f32 %v870, %v852
  %v882 = vadd.f32 %v874, %v854
  %v883 = vld [vmem:[#allocation2] sm:$0xee]
  %v884 = vld [vmem:[#allocation2 + $0x8] sm:$0x11]
  %v885 = vld [vmem:[%s3 + $0x200] sm:$0xff]
  %v886 = vld [vmem:[%s3 + $0x208] sm:$0xff]
  %v887 = vld [vmem:[%s3 + $0x210] sm:$0xff]
  %v888 = vld [vmem:[%s3 + $0x218] sm:$0xff]
  %v889 = vld [vmem:[%s3 + $0x220] sm:$0xff]
  %v890 = vld [vmem:[%s3 + $0x228] sm:$0xff]
  %v891 = vld [vmem:[%s3 + $0x230] sm:$0xff]
  %v892 = vld [vmem:[%s3 + $0x238] sm:$0xff]
  %v893 = vld [vmem:[%s3 + $0x240] sm:$0xff]
  %v894 = vld [vmem:[%s3 + $0x248] sm:$0xff]
  %v895 = vld [vmem:[%s3 + $0x250] sm:$0xff]
  %v896 = vld [vmem:[%s3 + $0x258] sm:$0xff]
  %v897 = vld [vmem:[%s3 + $0x260] sm:$0xff]
  %v898 = vld [vmem:[%s3 + $0x268] sm:$0xff]
  %v899 = vld [vmem:[%s3 + $0x270] sm:$0xff]
  %v900 = vld [vmem:[%s3 + $0x278] sm:$0xff]
  %v901 = vld [vmem:[%s3 + $0x280] sm:$0xff]
  %v902 = vld [vmem:[%s3 + $0x288] sm:$0xff]
  %v903 = vld [vmem:[%s3 + $0x290] sm:$0xff]
  %v904 = vld [vmem:[%s3 + $0x298] sm:$0xff]
  %v905 = vld [vmem:[%s3 + $0x2a0] sm:$0xff]
  %v906 = vld [vmem:[%s3 + $0x2a8] sm:$0xff]
  %v907 = vld [vmem:[%s3 + $0x2b0] sm:$0xff]
  %v908 = vld [vmem:[%s3 + $0x2b8] sm:$0xff]
  %v909 = vld [vmem:[%s3 + $0x2c0] sm:$0xff]
  %v910 = vld [vmem:[%s3 + $0x2c8] sm:$0xff]
  %v911 = vld [vmem:[%s3 + $0x2d0] sm:$0xff]
  %v912 = vld [vmem:[%s3 + $0x2d8] sm:$0xff]
  %v913 = vld [vmem:[%s3 + $0x2e0] sm:$0xff]
  %v914 = vld [vmem:[%s3 + $0x2e8] sm:$0xff]
  %v915 = vld [vmem:[%s3 + $0x2f0] sm:$0xff]
  %v916 = vld [vmem:[%s3 + $0x2f8] sm:$0xff]
  %v917 = vld [vmem:[%s3 + $0x300] sm:$0xff]
  %v918 = vld [vmem:[%s3 + $0x308] sm:$0xff]
  %v919 = vld [vmem:[%s3 + $0x310] sm:$0xff]
  %v920 = vld [vmem:[%s3 + $0x318] sm:$0xff]
  %v921 = vld [vmem:[%s3 + $0x320] sm:$0xff]
  %v922 = vld [vmem:[%s3 + $0x328] sm:$0xff]
  %v923 = vld [vmem:[%s3 + $0x330] sm:$0xff]
  %v924 = vld [vmem:[%s3 + $0x338] sm:$0xff]
  %v925 = vld [vmem:[%s3 + $0x340] sm:$0xff]
  %v926 = vld [vmem:[%s3 + $0x348] sm:$0xff]
  %v927 = vld [vmem:[%s3 + $0x350] sm:$0xff]
  %v928 = vld [vmem:[%s3 + $0x358] sm:$0xff]
  %v929 = vld [vmem:[%s3 + $0x360] sm:$0xff]
  %v930 = vld [vmem:[%s3 + $0x368] sm:$0xff]
  %v931 = vld [vmem:[%s3 + $0x370] sm:$0xff]
  %v932 = vld [vmem:[%s3 + $0x378] sm:$0xff]
  %v933 = vld [vmem:[%s3 + $0x380] sm:$0xff]
  %v934 = vld [vmem:[%s3 + $0x388] sm:$0xff]
  %v935 = vld [vmem:[%s3 + $0x390] sm:$0xff]
  %v936 = vld [vmem:[%s3 + $0x398] sm:$0xff]
  %v937 = vld [vmem:[%s3 + $0x3a0] sm:$0xff]
  %v938 = vld [vmem:[%s3 + $0x3a8] sm:$0xff]
  %v939 = vld [vmem:[%s3 + $0x3b0] sm:$0xff]
  %v940 = vld [vmem:[%s3 + $0x3b8] sm:$0xff]
  %v941 = vld [vmem:[%s3 + $0x3c0] sm:$0xff]
  %v942 = vld [vmem:[%s3 + $0x3c8] sm:$0xff]
  %v943 = vld [vmem:[%s3 + $0x3d0] sm:$0xff]
  %v944 = vld [vmem:[%s3 + $0x3d8] sm:$0xff]
  %v945 = vld [vmem:[%s3 + $0x3e0] sm:$0xff]
  %v946 = vld [vmem:[%s3 + $0x3e8] sm:$0xff]
  %v947 = vld [vmem:[%s3 + $0x3f0] sm:$0xff]
  %v948 = vld [vmem:[%s3 + $0x3f8] sm:$0xff]
  %v951 = vunpack.c.l.b16 %v883
  %v952 = vunpack.c.h.b16 %v883
  %v953 = vunpack.c.l.b16 %v884
  %v954 = vunpack.c.h.b16 %v884
  %v955 = vpack.c.b16 %v953, %v951
  %v956 = vpack.c.b16 %v954, %v952
  %v957 = vrot.slane %v955, 1
  %v958 = vrot.slane %v956, 1
  %v1025 = vunpack.c.l.b16 %v885
  %v1026 = vunpack.c.h.b16 %v885
  %v1027 = vunpack.c.l.b16 %v886
  %v1028 = vunpack.c.h.b16 %v886
  %v1029 = vunpack.c.l.b16 %v887
  %v1030 = vunpack.c.h.b16 %v887
  %v1031 = vunpack.c.l.b16 %v888
  %v1032 = vunpack.c.h.b16 %v888
  %v1033 = vunpack.c.l.b16 %v889
  %v1034 = vunpack.c.h.b16 %v889
  %v1035 = vunpack.c.l.b16 %v890
  %v1036 = vunpack.c.h.b16 %v890
  %v1037 = vunpack.c.l.b16 %v891
  %v1038 = vunpack.c.h.b16 %v891
  %v1039 = vunpack.c.l.b16 %v892
  %v1040 = vunpack.c.h.b16 %v892
  %v1041 = vunpack.c.l.b16 %v893
  %v1042 = vunpack.c.h.b16 %v893
  %v1043 = vunpack.c.l.b16 %v894
  %v1044 = vunpack.c.h.b16 %v894
  %v1045 = vunpack.c.l.b16 %v895
  %v1046 = vunpack.c.h.b16 %v895
  %v1047 = vunpack.c.l.b16 %v896
  %v1048 = vunpack.c.h.b16 %v896
  %v1049 = vunpack.c.l.b16 %v897
  %v1050 = vunpack.c.h.b16 %v897
  %v1051 = vunpack.c.l.b16 %v898
  %v1052 = vunpack.c.h.b16 %v898
  %v1053 = vunpack.c.l.b16 %v899
  %v1054 = vunpack.c.h.b16 %v899
  %v1055 = vunpack.c.l.b16 %v900
  %v1056 = vunpack.c.h.b16 %v900
  %v1057 = vunpack.c.l.b16 %v901
  %v1058 = vunpack.c.h.b16 %v901
  %v1059 = vunpack.c.l.b16 %v902
  %v1060 = vunpack.c.h.b16 %v902
  %v1061 = vunpack.c.l.b16 %v903
  %v1062 = vunpack.c.h.b16 %v903
  %v1063 = vunpack.c.l.b16 %v904
  %v1064 = vunpack.c.h.b16 %v904
  %v1065 = vunpack.c.l.b16 %v905
  %v1066 = vunpack.c.h.b16 %v905
  %v1067 = vunpack.c.l.b16 %v906
  %v1068 = vunpack.c.h.b16 %v906
  %v1069 = vunpack.c.l.b16 %v907
  %v1070 = vunpack.c.h.b16 %v907
  %v1071 = vunpack.c.l.b16 %v908
  %v1072 = vunpack.c.h.b16 %v908
  %v1073 = vunpack.c.l.b16 %v909
  %v1074 = vunpack.c.h.b16 %v909
  %v1075 = vunpack.c.l.b16 %v910
  %v1076 = vunpack.c.h.b16 %v910
  %v1077 = vunpack.c.l.b16 %v911
  %v1078 = vunpack.c.h.b16 %v911
  %v1079 = vunpack.c.l.b16 %v912
  %v1080 = vunpack.c.h.b16 %v912
  %v1081 = vunpack.c.l.b16 %v913
  %v1082 = vunpack.c.h.b16 %v913
  %v1083 = vunpack.c.l.b16 %v914
  %v1084 = vunpack.c.h.b16 %v914
  %v1085 = vunpack.c.l.b16 %v915
  %v1086 = vunpack.c.h.b16 %v915
  %v1087 = vunpack.c.l.b16 %v916
  %v1088 = vunpack.c.h.b16 %v916
  %v1089 = vunpack.c.l.b16 %v917
  %v1090 = vunpack.c.h.b16 %v917
  %v1091 = vunpack.c.l.b16 %v918
  %v1092 = vunpack.c.h.b16 %v918
  %v1093 = vunpack.c.l.b16 %v919
  %v1094 = vunpack.c.h.b16 %v919
  %v1095 = vunpack.c.l.b16 %v920
  %v1096 = vunpack.c.h.b16 %v920
  %v1097 = vunpack.c.l.b16 %v921
  %v1098 = vunpack.c.h.b16 %v921
  %v1099 = vunpack.c.l.b16 %v922
  %v1100 = vunpack.c.h.b16 %v922
  %v1101 = vunpack.c.l.b16 %v923
  %v1102 = vunpack.c.h.b16 %v923
  %v1103 = vunpack.c.l.b16 %v924
  %v1104 = vunpack.c.h.b16 %v924
  %v1105 = vunpack.c.l.b16 %v925
  %v1106 = vunpack.c.h.b16 %v925
  %v1107 = vunpack.c.l.b16 %v926
  %v1108 = vunpack.c.h.b16 %v926
  %v1109 = vunpack.c.l.b16 %v927
  %v1110 = vunpack.c.h.b16 %v927
  %v1111 = vunpack.c.l.b16 %v928
  %v1112 = vunpack.c.h.b16 %v928
  %v1113 = vunpack.c.l.b16 %v929
  %v1114 = vunpack.c.h.b16 %v929
  %v1115 = vunpack.c.l.b16 %v930
  %v1116 = vunpack.c.h.b16 %v930
  %v1117 = vunpack.c.l.b16 %v931
  %v1118 = vunpack.c.h.b16 %v931
  %v1119 = vunpack.c.l.b16 %v932
  %v1120 = vunpack.c.h.b16 %v932
  %v1121 = vunpack.c.l.b16 %v933
  %v1122 = vunpack.c.h.b16 %v933
  %v1123 = vunpack.c.l.b16 %v934
  %v1124 = vunpack.c.h.b16 %v934
  %v1125 = vunpack.c.l.b16 %v935
  %v1126 = vunpack.c.h.b16 %v935
  %v1127 = vunpack.c.l.b16 %v936
  %v1128 = vunpack.c.h.b16 %v936
  %v1129 = vunpack.c.l.b16 %v937
  %v1130 = vunpack.c.h.b16 %v937
  %v1131 = vunpack.c.l.b16 %v938
  %v1132 = vunpack.c.h.b16 %v938
  %v1133 = vunpack.c.l.b16 %v939
  %v1134 = vunpack.c.h.b16 %v939
  %v1135 = vunpack.c.l.b16 %v940
  %v1136 = vunpack.c.h.b16 %v940
  %v1137 = vunpack.c.l.b16 %v941
  %v1138 = vunpack.c.h.b16 %v941
  %v1139 = vunpack.c.l.b16 %v942
  %v1140 = vunpack.c.h.b16 %v942
  %v1141 = vunpack.c.l.b16 %v943
  %v1142 = vunpack.c.h.b16 %v943
  %v1143 = vunpack.c.l.b16 %v944
  %v1144 = vunpack.c.h.b16 %v944
  %v1145 = vunpack.c.l.b16 %v945
  %v1146 = vunpack.c.h.b16 %v945
  %v1147 = vunpack.c.l.b16 %v946
  %v1148 = vunpack.c.h.b16 %v946
  %v1149 = vunpack.c.l.b16 %v947
  %v1150 = vunpack.c.h.b16 %v947
  %v1151 = vunpack.c.l.b16 %v948
  %v1152 = vunpack.c.h.b16 %v948
  %v1153 = vpack.c.b16 %v1029, %v1025
  %v1154 = vpack.c.b16 %v1030, %v1026
  %v1155 = vpack.c.b16 %v1031, %v1027
  %v1156 = vpack.c.b16 %v1032, %v1028
  %v1157 = vpack.c.b16 %v1037, %v1033
  %v1158 = vpack.c.b16 %v1038, %v1034
  %v1159 = vpack.c.b16 %v1039, %v1035
  %v1160 = vpack.c.b16 %v1040, %v1036
  %v1161 = vpack.c.b16 %v1045, %v1041
  %v1162 = vpack.c.b16 %v1046, %v1042
  %v1163 = vpack.c.b16 %v1047, %v1043
  %v1164 = vpack.c.b16 %v1048, %v1044
  %v1165 = vpack.c.b16 %v1053, %v1049
  %v1166 = vpack.c.b16 %v1054, %v1050
  %v1167 = vpack.c.b16 %v1055, %v1051
  %v1168 = vpack.c.b16 %v1056, %v1052
  %v1169 = vpack.c.b16 %v1061, %v1057
  %v1170 = vpack.c.b16 %v1062, %v1058
  %v1171 = vpack.c.b16 %v1063, %v1059
  %v1172 = vpack.c.b16 %v1064, %v1060
  %v1173 = vpack.c.b16 %v1069, %v1065
  %v1174 = vpack.c.b16 %v1070, %v1066
  %v1175 = vpack.c.b16 %v1071, %v1067
  %v1176 = vpack.c.b16 %v1072, %v1068
  %v1177 = vpack.c.b16 %v1077, %v1073
  %v1178 = vpack.c.b16 %v1078, %v1074
  %v1179 = vpack.c.b16 %v1079, %v1075
  %v1180 = vpack.c.b16 %v1080, %v1076
  %v1181 = vpack.c.b16 %v1085, %v1081
  %v1182 = vpack.c.b16 %v1086, %v1082
  %v1183 = vpack.c.b16 %v1087, %v1083
  %v1184 = vpack.c.b16 %v1088, %v1084
  %v1185 = vpack.c.b16 %v1093, %v1089
  %v1186 = vpack.c.b16 %v1094, %v1090
  %v1187 = vpack.c.b16 %v1095, %v1091
  %v1188 = vpack.c.b16 %v1096, %v1092
  %v1189 = vpack.c.b16 %v1101, %v1097
  %v1190 = vpack.c.b16 %v1102, %v1098
  %v1191 = vpack.c.b16 %v1103, %v1099
  %v1192 = vpack.c.b16 %v1104, %v1100
  %v1193 = vpack.c.b16 %v1109, %v1105
  %v1194 = vpack.c.b16 %v1110, %v1106
  %v1195 = vpack.c.b16 %v1111, %v1107
  %v1196 = vpack.c.b16 %v1112, %v1108
  %v1197 = vpack.c.b16 %v1117, %v1113
  %v1198 = vpack.c.b16 %v1118, %v1114
  %v1199 = vpack.c.b16 %v1119, %v1115
  %v1200 = vpack.c.b16 %v1120, %v1116
  %v1201 = vpack.c.b16 %v1125, %v1121
  %v1202 = vpack.c.b16 %v1126, %v1122
  %v1203 = vpack.c.b16 %v1127, %v1123
  %v1204 = vpack.c.b16 %v1128, %v1124
  %v1205 = vpack.c.b16 %v1133, %v1129
  %v1206 = vpack.c.b16 %v1134, %v1130
  %v1207 = vpack.c.b16 %v1135, %v1131
  %v1208 = vpack.c.b16 %v1136, %v1132
  %v1209 = vpack.c.b16 %v1141, %v1137
  %v1210 = vpack.c.b16 %v1142, %v1138
  %v1211 = vpack.c.b16 %v1143, %v1139
  %v1212 = vpack.c.b16 %v1144, %v1140
  %v1213 = vpack.c.b16 %v1149, %v1145
  %v1214 = vpack.c.b16 %v1150, %v1146
  %v1215 = vpack.c.b16 %v1151, %v1147
  %v1216 = vpack.c.b16 %v1152, %v1148
  %1281 = vmatprep.subr.bf16.mxu0 %v1154
  %1282 = vmatpush1.bf16.msra.mxu0 %v1153
  %1283 = vmatprep.subr.bf16.mxu0 %v1158
  %1284 = vmatpush1.bf16.msra.mxu0 %v1157
  %1285 = vmatprep.subr.bf16.mxu0 %v1162
  %1286 = vmatpush1.bf16.msra.mxu0 %v1161
  %1287 = vmatprep.subr.bf16.mxu0 %v1166
  %1288 = vmatpush1.bf16.msra.mxu0 %v1165
  %1289 = vmatprep.subr.bf16.mxu0 %v1170
  %1290 = vmatpush1.bf16.msra.mxu0 %v1169
  %1291 = vmatprep.subr.bf16.mxu0 %v1174
  %1292 = vmatpush1.bf16.msra.mxu0 %v1173
  %1293 = vmatprep.subr.bf16.mxu0 %v1178
  %1294 = vmatpush1.bf16.msra.mxu0 %v1177
  %1295 = vmatprep.subr.bf16.mxu0 %v1182
  %1296 = vmatpush1.bf16.msra.mxu0 %v1181
  %1297 = vmatprep.subr.bf16.mxu0 %v1186
  %1298 = vmatpush1.bf16.msra.mxu0 %v1185
  %1299 = vmatprep.subr.bf16.mxu0 %v1190
  %1300 = vmatpush1.bf16.msra.mxu0 %v1189
  %1301 = vmatprep.subr.bf16.mxu0 %v1194
  %1302 = vmatpush1.bf16.msra.mxu0 %v1193
  %1303 = vmatprep.subr.bf16.mxu0 %v1198
  %1304 = vmatpush1.bf16.msra.mxu0 %v1197
  %1305 = vmatprep.subr.bf16.mxu0 %v1202
  %1306 = vmatpush1.bf16.msra.mxu0 %v1201
  %1307 = vmatprep.subr.bf16.mxu0 %v1206
  %1308 = vmatpush1.bf16.msra.mxu0 %v1205
  %1309 = vmatprep.subr.bf16.mxu0 %v1210
  %1310 = vmatpush1.bf16.msra.mxu0 %v1209
  %1311 = vmatprep.subr.bf16.mxu0 %v1214
  %1312 = vmatpush1.bf16.msra.mxu0 %v1213
  %1313 = vmatprep.mubr.bf16.mxu0 %v958
  %1314 = vmatmul.mubr.bf16.gmra.mrb[0].mxu0 %v957
  %v1315 = vpop.f32.mrb[0].mxu0
  %v1316 = vadd.f32 0.0, %v1315
  %v1317 = vpop.f32.mrb[0].mxu0
  %v1318 = vadd.f32 0.0, %v1317
  %v1319 = vpop.f32.mrb[0].mxu0
  %v1320 = vpop.f32.mrb[0].mxu0
  %1321 = vdwg.mxu0
  %1322 = vmatprep.subr.bf16.mxu0 %v1156
  %1323 = vmatpush1.bf16.msra.mxu0 %v1155
  %1324 = vmatprep.subr.bf16.mxu0 %v1160
  %1325 = vmatpush1.bf16.msra.mxu0 %v1159
  %1326 = vmatprep.subr.bf16.mxu0 %v1164
  %1327 = vmatpush1.bf16.msra.mxu0 %v1163
  %1328 = vmatprep.subr.bf16.mxu0 %v1168
  %1329 = vmatpush1.bf16.msra.mxu0 %v1167
  %1330 = vmatprep.subr.bf16.mxu0 %v1172
  %1331 = vmatpush1.bf16.msra.mxu0 %v1171
  %1332 = vmatprep.subr.bf16.mxu0 %v1176
  %1333 = vmatpush1.bf16.msra.mxu0 %v1175
  %1334 = vmatprep.subr.bf16.mxu0 %v1180
  %1335 = vmatpush1.bf16.msra.mxu0 %v1179
  %1336 = vmatprep.subr.bf16.mxu0 %v1184
  %1337 = vmatpush1.bf16.msra.mxu0 %v1183
  %1338 = vmatprep.subr.bf16.mxu0 %v1188
  %1339 = vmatpush1.bf16.msra.mxu0 %v1187
  %1340 = vmatprep.subr.bf16.mxu0 %v1192
  %1341 = vmatpush1.bf16.msra.mxu0 %v1191
  %1342 = vmatprep.subr.bf16.mxu0 %v1196
  %1343 = vmatpush1.bf16.msra.mxu0 %v1195
  %1344 = vmatprep.subr.bf16.mxu0 %v1200
  %1345 = vmatpush1.bf16.msra.mxu0 %v1199
  %1346 = vmatprep.subr.bf16.mxu0 %v1204
  %1347 = vmatpush1.bf16.msra.mxu0 %v1203
  %1348 = vmatprep.subr.bf16.mxu0 %v1208
  %1349 = vmatpush1.bf16.msra.mxu0 %v1207
  %1350 = vmatprep.subr.bf16.mxu0 %v1212
  %1351 = vmatpush1.bf16.msra.mxu0 %v1211
  %1352 = vmatprep.subr.bf16.mxu0 %v1216
  %1353 = vmatpush1.bf16.msra.mxu0 %v1215
  %1354 = vmatprep.mubr.bf16.mxu0 %v958
  %1355 = vmatmul.mubr.bf16.gmra.mrb[0].mxu0 %v957
  %v1356 = vpop.f32.mrb[0].mxu0
  %v1357 = vadd.f32 0.0, %v1356
  %v1358 = vpop.f32.mrb[0].mxu0
  %v1359 = vadd.f32 0.0, %v1358
  %v1360 = vpop.f32.mrb[0].mxu0
  %v1361 = vpop.f32.mrb[0].mxu0
  %1362 = vdwg.mxu0
  %v1363 = vadd.f32 %v879, %v1316
  %v1364 = vadd.f32 %v880, %v1318
  %v1365 = vadd.f32 %v881, %v1357
  %v1366 = vadd.f32 %v882, %v1359
  %v1367 = vld [vmem:[#allocation2] sm:$0xcc]
  %v1368 = vld [vmem:[#allocation2 + $0x8] sm:$0x33]
  %v1369 = vld [vmem:[%s3 + $0x400] sm:$0xff]
  %v1370 = vld [vmem:[%s3 + $0x408] sm:$0xff]
  %v1371 = vld [vmem:[%s3 + $0x410] sm:$0xff]
  %v1372 = vld [vmem:[%s3 + $0x418] sm:$0xff]
  %v1373 = vld [vmem:[%s3 + $0x420] sm:$0xff]
  %v1374 = vld [vmem:[%s3 + $0x428] sm:$0xff]
  %v1375 = vld [vmem:[%s3 + $0x430] sm:$0xff]
  %v1376 = vld [vmem:[%s3 + $0x438] sm:$0xff]
  %v1377 = vld [vmem:[%s3 + $0x440] sm:$0xff]
  %v1378 = vld [vmem:[%s3 + $0x448] sm:$0xff]
  %v1379 = vld [vmem:[%s3 + $0x450] sm:$0xff]
  %v1380 = vld [vmem:[%s3 + $0x458] sm:$0xff]
  %v1381 = vld [vmem:[%s3 + $0x460] sm:$0xff]
  %v1382 = vld [vmem:[%s3 + $0x468] sm:$0xff]
  %v1383 = vld [vmem:[%s3 + $0x470] sm:$0xff]
  %v1384 = vld [vmem:[%s3 + $0x478] sm:$0xff]
  %v1385 = vld [vmem:[%s3 + $0x480] sm:$0xff]
  %v1386 = vld [vmem:[%s3 + $0x488] sm:$0xff]
  %v1387 = vld [vmem:[%s3 + $0x490] sm:$0xff]
  %v1388 = vld [vmem:[%s3 + $0x498] sm:$0xff]
  %v1389 = vld [vmem:[%s3 + $0x4a0] sm:$0xff]
  %v1390 = vld [vmem:[%s3 + $0x4a8] sm:$0xff]
  %v1391 = vld [vmem:[%s3 + $0x4b0] sm:$0xff]
  %v1392 = vld [vmem:[%s3 + $0x4b8] sm:$0xff]
  %v1393 = vld [vmem:[%s3 + $0x4c0] sm:$0xff]
  %v1394 = vld [vmem:[%s3 + $0x4c8] sm:$0xff]
  %v1395 = vld [vmem:[%s3 + $0x4d0] sm:$0xff]
  %v1396 = vld [vmem:[%s3 + $0x4d8] sm:$0xff]
  %v1397 = vld [vmem:[%s3 + $0x4e0] sm:$0xff]
  %v1398 = vld [vmem:[%s3 + $0x4e8] sm:$0xff]
  %v1399 = vld [vmem:[%s3 + $0x4f0] sm:$0xff]
  %v1400 = vld [vmem:[%s3 + $0x4f8] sm:$0xff]
  %v1401 = vld [vmem:[%s3 + $0x500] sm:$0xff]
  %v1402 = vld [vmem:[%s3 + $0x508] sm:$0xff]
  %v1403 = vld [vmem:[%s3 + $0x510] sm:$0xff]
  %v1404 = vld [vmem:[%s3 + $0x518] sm:$0xff]
  %v1405 = vld [vmem:[%s3 + $0x520] sm:$0xff]
  %v1406 = vld [vmem:[%s3 + $0x528] sm:$0xff]
  %v1407 = vld [vmem:[%s3 + $0x530] sm:$0xff]
  %v1408 = vld [vmem:[%s3 + $0x538] sm:$0xff]
  %v1409 = vld [vmem:[%s3 + $0x540] sm:$0xff]
  %v1410 = vld [vmem:[%s3 + $0x548] sm:$0xff]
  %v1411 = vld [vmem:[%s3 + $0x550] sm:$0xff]
  %v1412 = vld [vmem:[%s3 + $0x558] sm:$0xff]
  %v1413 = vld [vmem:[%s3 + $0x560] sm:$0xff]
  %v1414 = vld [vmem:[%s3 + $0x568] sm:$0xff]
  %v1415 = vld [vmem:[%s3 + $0x570] sm:$0xff]
  %v1416 = vld [vmem:[%s3 + $0x578] sm:$0xff]
  %v1417 = vld [vmem:[%s3 + $0x580] sm:$0xff]
  %v1418 = vld [vmem:[%s3 + $0x588] sm:$0xff]
  %v1419 = vld [vmem:[%s3 + $0x590] sm:$0xff]
  %v1420 = vld [vmem:[%s3 + $0x598] sm:$0xff]
  %v1421 = vld [vmem:[%s3 + $0x5a0] sm:$0xff]
  %v1422 = vld [vmem:[%s3 + $0x5a8] sm:$0xff]
  %v1423 = vld [vmem:[%s3 + $0x5b0] sm:$0xff]
  %v1424 = vld [vmem:[%s3 + $0x5b8] sm:$0xff]
  %v1425 = vld [vmem:[%s3 + $0x5c0] sm:$0xff]
  %v1426 = vld [vmem:[%s3 + $0x5c8] sm:$0xff]
  %v1427 = vld [vmem:[%s3 + $0x5d0] sm:$0xff]
  %v1428 = vld [vmem:[%s3 + $0x5d8] sm:$0xff]
  %v1429 = vld [vmem:[%s3 + $0x5e0] sm:$0xff]
  %v1430 = vld [vmem:[%s3 + $0x5e8] sm:$0xff]
  %v1431 = vld [vmem:[%s3 + $0x5f0] sm:$0xff]
  %v1432 = vld [vmem:[%s3 + $0x5f8] sm:$0xff]
  %v1435 = vunpack.c.l.b16 %v1367
  %v1436 = vunpack.c.h.b16 %v1367
  %v1437 = vunpack.c.l.b16 %v1368
  %v1438 = vunpack.c.h.b16 %v1368
  %v1439 = vpack.c.b16 %v1437, %v1435
  %v1440 = vpack.c.b16 %v1438, %v1436
  %v1441 = vrot.slane %v1439, 2
  %v1442 = vrot.slane %v1440, 2
  %v1509 = vunpack.c.l.b16 %v1369
  %v1510 = vunpack.c.h.b16 %v1369
  %v1511 = vunpack.c.l.b16 %v1370
  %v1512 = vunpack.c.h.b16 %v1370
  %v1513 = vunpack.c.l.b16 %v1371
  %v1514 = vunpack.c.h.b16 %v1371
  %v1515 = vunpack.c.l.b16 %v1372
  %v1516 = vunpack.c.h.b16 %v1372
  %v1517 = vunpack.c.l.b16 %v1373
  %v1518 = vunpack.c.h.b16 %v1373
  %v1519 = vunpack.c.l.b16 %v1374
  %v1520 = vunpack.c.h.b16 %v1374
  %v1521 = vunpack.c.l.b16 %v1375
  %v1522 = vunpack.c.h.b16 %v1375
  %v1523 = vunpack.c.l.b16 %v1376
  %v1524 = vunpack.c.h.b16 %v1376
  %v1525 = vunpack.c.l.b16 %v1377
  %v1526 = vunpack.c.h.b16 %v1377
  %v1527 = vunpack.c.l.b16 %v1378
  %v1528 = vunpack.c.h.b16 %v1378
  %v1529 = vunpack.c.l.b16 %v1379
  %v1530 = vunpack.c.h.b16 %v1379
  %v1531 = vunpack.c.l.b16 %v1380
  %v1532 = vunpack.c.h.b16 %v1380
  %v1533 = vunpack.c.l.b16 %v1381
  %v1534 = vunpack.c.h.b16 %v1381
  %v1535 = vunpack.c.l.b16 %v1382
  %v1536 = vunpack.c.h.b16 %v1382
  %v1537 = vunpack.c.l.b16 %v1383
  %v1538 = vunpack.c.h.b16 %v1383
  %v1539 = vunpack.c.l.b16 %v1384
  %v1540 = vunpack.c.h.b16 %v1384
  %v1541 = vunpack.c.l.b16 %v1385
  %v1542 = vunpack.c.h.b16 %v1385
  %v1543 = vunpack.c.l.b16 %v1386
  %v1544 = vunpack.c.h.b16 %v1386
  %v1545 = vunpack.c.l.b16 %v1387
  %v1546 = vunpack.c.h.b16 %v1387
  %v1547 = vunpack.c.l.b16 %v1388
  %v1548 = vunpack.c.h.b16 %v1388
  %v1549 = vunpack.c.l.b16 %v1389
  %v1550 = vunpack.c.h.b16 %v1389
  %v1551 = vunpack.c.l.b16 %v1390
  %v1552 = vunpack.c.h.b16 %v1390
  %v1553 = vunpack.c.l.b16 %v1391
  %v1554 = vunpack.c.h.b16 %v1391
  %v1555 = vunpack.c.l.b16 %v1392
  %v1556 = vunpack.c.h.b16 %v1392
  %v1557 = vunpack.c.l.b16 %v1393
  %v1558 = vunpack.c.h.b16 %v1393
  %v1559 = vunpack.c.l.b16 %v1394
  %v1560 = vunpack.c.h.b16 %v1394
  %v1561 = vunpack.c.l.b16 %v1395
  %v1562 = vunpack.c.h.b16 %v1395
  %v1563 = vunpack.c.l.b16 %v1396
  %v1564 = vunpack.c.h.b16 %v1396
  %v1565 = vunpack.c.l.b16 %v1397
  %v1566 = vunpack.c.h.b16 %v1397
  %v1567 = vunpack.c.l.b16 %v1398
  %v1568 = vunpack.c.h.b16 %v1398
  %v1569 = vunpack.c.l.b16 %v1399
  %v1570 = vunpack.c.h.b16 %v1399
  %v1571 = vunpack.c.l.b16 %v1400
  %v1572 = vunpack.c.h.b16 %v1400
  %v1573 = vunpack.c.l.b16 %v1401
  %v1574 = vunpack.c.h.b16 %v1401
  %v1575 = vunpack.c.l.b16 %v1402
  %v1576 = vunpack.c.h.b16 %v1402
  %v1577 = vunpack.c.l.b16 %v1403
  %v1578 = vunpack.c.h.b16 %v1403
  %v1579 = vunpack.c.l.b16 %v1404
  %v1580 = vunpack.c.h.b16 %v1404
  %v1581 = vunpack.c.l.b16 %v1405
  %v1582 = vunpack.c.h.b16 %v1405
  %v1583 = vunpack.c.l.b16 %v1406
  %v1584 = vunpack.c.h.b16 %v1406
  %v1585 = vunpack.c.l.b16 %v1407
  %v1586 = vunpack.c.h.b16 %v1407
  %v1587 = vunpack.c.l.b16 %v1408
  %v1588 = vunpack.c.h.b16 %v1408
  %v1589 = vunpack.c.l.b16 %v1409
  %v1590 = vunpack.c.h.b16 %v1409
  %v1591 = vunpack.c.l.b16 %v1410
  %v1592 = vunpack.c.h.b16 %v1410
  %v1593 = vunpack.c.l.b16 %v1411
  %v1594 = vunpack.c.h.b16 %v1411
  %v1595 = vunpack.c.l.b16 %v1412
  %v1596 = vunpack.c.h.b16 %v1412
  %v1597 = vunpack.c.l.b16 %v1413
  %v1598 = vunpack.c.h.b16 %v1413
  %v1599 = vunpack.c.l.b16 %v1414
  %v1600 = vunpack.c.h.b16 %v1414
  %v1601 = vunpack.c.l.b16 %v1415
  %v1602 = vunpack.c.h.b16 %v1415
  %v1603 = vunpack.c.l.b16 %v1416
  %v1604 = vunpack.c.h.b16 %v1416
  %v1605 = vunpack.c.l.b16 %v1417
  %v1606 = vunpack.c.h.b16 %v1417
  %v1607 = vunpack.c.l.b16 %v1418
  %v1608 = vunpack.c.h.b16 %v1418
  %v1609 = vunpack.c.l.b16 %v1419
  %v1610 = vunpack.c.h.b16 %v1419
  %v1611 = vunpack.c.l.b16 %v1420
  %v1612 = vunpack.c.h.b16 %v1420
  %v1613 = vunpack.c.l.b16 %v1421
  %v1614 = vunpack.c.h.b16 %v1421
  %v1615 = vunpack.c.l.b16 %v1422
  %v1616 = vunpack.c.h.b16 %v1422
  %v1617 = vunpack.c.l.b16 %v1423
  %v1618 = vunpack.c.h.b16 %v1423
  %v1619 = vunpack.c.l.b16 %v1424
  %v1620 = vunpack.c.h.b16 %v1424
  %v1621 = vunpack.c.l.b16 %v1425
  %v1622 = vunpack.c.h.b16 %v1425
  %v1623 = vunpack.c.l.b16 %v1426
  %v1624 = vunpack.c.h.b16 %v1426
  %v1625 = vunpack.c.l.b16 %v1427
  %v1626 = vunpack.c.h.b16 %v1427
  %v1627 = vunpack.c.l.b16 %v1428
  %v1628 = vunpack.c.h.b16 %v1428
  %v1629 = vunpack.c.l.b16 %v1429
  %v1630 = vunpack.c.h.b16 %v1429
  %v1631 = vunpack.c.l.b16 %v1430
  %v1632 = vunpack.c.h.b16 %v1430
  %v1633 = vunpack.c.l.b16 %v1431
  %v1634 = vunpack.c.h.b16 %v1431
  %v1635 = vunpack.c.l.b16 %v1432
  %v1636 = vunpack.c.h.b16 %v1432
  %v1637 = vpack.c.b16 %v1513, %v1509
  %v1638 = vpack.c.b16 %v1514, %v1510
  %v1639 = vpack.c.b16 %v1515, %v1511
  %v1640 = vpack.c.b16 %v1516, %v1512
  %v1641 = vpack.c.b16 %v1521, %v1517
  %v1642 = vpack.c.b16 %v1522, %v1518
  %v1643 = vpack.c.b16 %v1523, %v1519
  %v1644 = vpack.c.b16 %v1524, %v1520
  %v1645 = vpack.c.b16 %v1529, %v1525
  %v1646 = vpack.c.b16 %v1530, %v1526
  %v1647 = vpack.c.b16 %v1531, %v1527
  %v1648 = vpack.c.b16 %v1532, %v1528
  %v1649 = vpack.c.b16 %v1537, %v1533
  %v1650 = vpack.c.b16 %v1538, %v1534
  %v1651 = vpack.c.b16 %v1539, %v1535
  %v1652 = vpack.c.b16 %v1540, %v1536
  %v1653 = vpack.c.b16 %v1545, %v1541
  %v1654 = vpack.c.b16 %v1546, %v1542
  %v1655 = vpack.c.b16 %v1547, %v1543
  %v1656 = vpack.c.b16 %v1548, %v1544
  %v1657 = vpack.c.b16 %v1553, %v1549
  %v1658 = vpack.c.b16 %v1554, %v1550
  %v1659 = vpack.c.b16 %v1555, %v1551
  %v1660 = vpack.c.b16 %v1556, %v1552
  %v1661 = vpack.c.b16 %v1561, %v1557
  %v1662 = vpack.c.b16 %v1562, %v1558
  %v1663 = vpack.c.b16 %v1563, %v1559
  %v1664 = vpack.c.b16 %v1564, %v1560
  %v1665 = vpack.c.b16 %v1569, %v1565
  %v1666 = vpack.c.b16 %v1570, %v1566
  %v1667 = vpack.c.b16 %v1571, %v1567
  %v1668 = vpack.c.b16 %v1572, %v1568
  %v1669 = vpack.c.b16 %v1577, %v1573
  %v1670 = vpack.c.b16 %v1578, %v1574
  %v1671 = vpack.c.b16 %v1579, %v1575
  %v1672 = vpack.c.b16 %v1580, %v1576
  %v1673 = vpack.c.b16 %v1585, %v1581
  %v1674 = vpack.c.b16 %v1586, %v1582
  %v1675 = vpack.c.b16 %v1587, %v1583
  %v1676 = vpack.c.b16 %v1588, %v1584
  %v1677 = vpack.c.b16 %v1593, %v1589
  %v1678 = vpack.c.b16 %v1594, %v1590
  %v1679 = vpack.c.b16 %v1595, %v1591
  %v1680 = vpack.c.b16 %v1596, %v1592
  %v1681 = vpack.c.b16 %v1601, %v1597
  %v1682 = vpack.c.b16 %v1602, %v1598
  %v1683 = vpack.c.b16 %v1603, %v1599
  %v1684 = vpack.c.b16 %v1604, %v1600
  %v1685 = vpack.c.b16 %v1609, %v1605
  %v1686 = vpack.c.b16 %v1610, %v1606
  %v1687 = vpack.c.b16 %v1611, %v1607
  %v1688 = vpack.c.b16 %v1612, %v1608
  %v1689 = vpack.c.b16 %v1617, %v1613
  %v1690 = vpack.c.b16 %v1618, %v1614
  %v1691 = vpack.c.b16 %v1619, %v1615
  %v1692 = vpack.c.b16 %v1620, %v1616
  %v1693 = vpack.c.b16 %v1625, %v1621
  %v1694 = vpack.c.b16 %v1626, %v1622
  %v1695 = vpack.c.b16 %v1627, %v1623
  %v1696 = vpack.c.b16 %v1628, %v1624
  %v1697 = vpack.c.b16 %v1633, %v1629
  %v1698 = vpack.c.b16 %v1634, %v1630
  %v1699 = vpack.c.b16 %v1635, %v1631
  %v1700 = vpack.c.b16 %v1636, %v1632
  %1765 = vmatprep.subr.bf16.mxu0 %v1638
  %1766 = vmatpush1.bf16.msra.mxu0 %v1637
  %1767 = vmatprep.subr.bf16.mxu0 %v1642
  %1768 = vmatpush1.bf16.msra.mxu0 %v1641
  %1769 = vmatprep.subr.bf16.mxu0 %v1646
  %1770 = vmatpush1.bf16.msra.mxu0 %v1645
  %1771 = vmatprep.subr.bf16.mxu0 %v1650
  %1772 = vmatpush1.bf16.msra.mxu0 %v1649
  %1773 = vmatprep.subr.bf16.mxu0 %v1654
  %1774 = vmatpush1.bf16.msra.mxu0 %v1653
  %1775 = vmatprep.subr.bf16.mxu0 %v1658
  %1776 = vmatpush1.bf16.msra.mxu0 %v1657
  %1777 = vmatprep.subr.bf16.mxu0 %v1662
  %1778 = vmatpush1.bf16.msra.mxu0 %v1661
  %1779 = vmatprep.subr.bf16.mxu0 %v1666
  %1780 = vmatpush1.bf16.msra.mxu0 %v1665
  %1781 = vmatprep.subr.bf16.mxu0 %v1670
  %1782 = vmatpush1.bf16.msra.mxu0 %v1669
  %1783 = vmatprep.subr.bf16.mxu0 %v1674
  %1784 = vmatpush1.bf16.msra.mxu0 %v1673
  %1785 = vmatprep.subr.bf16.mxu0 %v1678
  %1786 = vmatpush1.bf16.msra.mxu0 %v1677
  %1787 = vmatprep.subr.bf16.mxu0 %v1682
  %1788 = vmatpush1.bf16.msra.mxu0 %v1681
  %1789 = vmatprep.subr.bf16.mxu0 %v1686
  %1790 = vmatpush1.bf16.msra.mxu0 %v1685
  %1791 = vmatprep.subr.bf16.mxu0 %v1690
  %1792 = vmatpush1.bf16.msra.mxu0 %v1689
  %1793 = vmatprep.subr.bf16.mxu0 %v1694
  %1794 = vmatpush1.bf16.msra.mxu0 %v1693
  %1795 = vmatprep.subr.bf16.mxu0 %v1698
  %1796 = vmatpush1.bf16.msra.mxu0 %v1697
  %1797 = vmatprep.mubr.bf16.mxu0 %v1442
  %1798 = vmatmul.mubr.bf16.gmra.mrb[0].mxu0 %v1441
  %v1799 = vpop.f32.mrb[0].mxu0
  %v1800 = vadd.f32 0.0, %v1799
  %v1801 = vpop.f32.mrb[0].mxu0
  %v1802 = vadd.f32 0.0, %v1801
  %v1803 = vpop.f32.mrb[0].mxu0
  %v1804 = vpop.f32.mrb[0].mxu0
  %1805 = vdwg.mxu0
  %1806 = vmatprep.subr.bf16.mxu0 %v1640
  %1807 = vmatpush1.bf16.msra.mxu0 %v1639
  %1808 = vmatprep.subr.bf16.mxu0 %v1644
  %1809 = vmatpush1.bf16.msra.mxu0 %v1643
  %1810 = vmatprep.subr.bf16.mxu0 %v1648
  %1811 = vmatpush1.bf16.msra.mxu0 %v1647
  %1812 = vmatprep.subr.bf16.mxu0 %v1652
  %1813 = vmatpush1.bf16.msra.mxu0 %v1651
  %1814 = vmatprep.subr.bf16.mxu0 %v1656
  %1815 = vmatpush1.bf16.msra.mxu0 %v1655
  %1816 = vmatprep.subr.bf16.mxu0 %v1660
  %1817 = vmatpush1.bf16.msra.mxu0 %v1659
  %1818 = vmatprep.subr.bf16.mxu0 %v1664
  %1819 = vmatpush1.bf16.msra.mxu0 %v1663
  %1820 = vmatprep.subr.bf16.mxu0 %v1668
  %1821 = vmatpush1.bf16.msra.mxu0 %v1667
  %1822 = vmatprep.subr.bf16.mxu0 %v1672
  %1823 = vmatpush1.bf16.msra.mxu0 %v1671
  %1824 = vmatprep.subr.bf16.mxu0 %v1676
  %1825 = vmatpush1.bf16.msra.mxu0 %v1675
  %1826 = vmatprep.subr.bf16.mxu0 %v1680
  %1827 = vmatpush1.bf16.msra.mxu0 %v1679
  %1828 = vmatprep.subr.bf16.mxu0 %v1684
  %1829 = vmatpush1.bf16.msra.mxu0 %v1683
  %1830 = vmatprep.subr.bf16.mxu0 %v1688
  %1831 = vmatpush1.bf16.msra.mxu0 %v1687
  %1832 = vmatprep.subr.bf16.mxu0 %v1692
  %1833 = vmatpush1.bf16.msra.mxu0 %v1691
  %1834 = vmatprep.subr.bf16.mxu0 %v1696
  %1835 = vmatpush1.bf16.msra.mxu0 %v1695
  %1836 = vmatprep.subr.bf16.mxu0 %v1700
  %1837 = vmatpush1.bf16.msra.mxu0 %v1699
  %1838 = vmatprep.mubr.bf16.mxu0 %v1442
  %1839 = vmatmul.mubr.bf16.gmra.mrb[0].mxu0 %v1441
  %v1840 = vpop.f32.mrb[0].mxu0
  %v1841 = vadd.f32 0.0, %v1840
  %v1842 = vpop.f32.mrb[0].mxu0
  %v1843 = vadd.f32 0.0, %v1842
  %v1844 = vpop.f32.mrb[0].mxu0
  %v1845 = vpop.f32.mrb[0].mxu0
  %1846 = vdwg.mxu0
  %v1847 = vadd.f32 %v1363, %v1800
  %v1848 = vadd.f32 %v1364, %v1802
  %v1849 = vadd.f32 %v1365, %v1841
  %v1850 = vadd.f32 %v1366, %v1843
  %v1851 = vmax.f32 %v1847, 0.0
  %v1852 = vmax.f32 %v1848, 0.0
  %v1853 = vmax.f32 %v1849, 0.0
  %v1854 = vmax.f32 %v1850, 0.0
  %v1855 = vpack.c.bf16 %v1851, %v1851
  %v1856 = vpack.c.bf16 %v1852, %v1852
  %v1857 = vpack.c.bf16 %v1853, %v1853
  %v1858 = vpack.c.bf16 %v1854, %v1854
  %v1861 = vunpack.c.l.b16 %v1855
  %v1862 = vunpack.c.l.b16 %v1856
  %v1863 = vpack.c.b16 %v1862, %v1861
  %v1864 = vrot.slane %v1863, 7
  %1866 = vst [vmem:[#allocation3] sm:$0x22] %v1864
  %v1869 = vunpack.c.l.b16 %v1857
  %v1870 = vunpack.c.l.b16 %v1858
  %v1871 = vpack.c.b16 %v1870, %v1869
  %v1872 = vrot.slane %v1871, 6
  %1874 = vst [vmem:[#allocation3] sm:$0x44] %v1872
  %v1875 = vrot.slane %v1863, 6
  %1877 = vst [vmem:[#allocation3] sm:$0x88] %v1875
  %v1878 = vrot.slane %v1871, 5
  %v1879 = vrot.slane %v1878, 4
  %1881 = vst [vmem:[#allocation3 + $0x8] sm:$0x11] %v1879
  %v1882 = vrot.slane %v1863, 5
  %v1883 = vrot.slane %v1882, 4
  %1885 = vst [vmem:[#allocation3 + $0x8] sm:$0x22] %v1883
  %1887 = vst [vmem:[#allocation3 + $0x8] sm:$0x44] %v1871
  %1889 = vst [vmem:[#allocation3 + $0x8] sm:$0x88] %v1863
  %v1890 = vrot.slane %v1871, 7
  %v1891 = vrot.slane %v1890, 4
  %1893 = vst [vmem:[#allocation3 + $0x10] sm:$0x11] %v1891
  %v1894 = vld [vmem:[#allocation3] sm:$0xff]
  %v1895 = vld [vmem:[#allocation3 + $0x8] sm:$0xff]
  %v1896 = vld [vmem:[%s5] sm:$0xf]
  %v1897 = vld [vmem:[%s5 + $0x4] sm:$0xf]
  %v1898 = vld [vmem:[%s5 + $0x8] sm:$0xf]
  %v1899 = vld [vmem:[%s5 + $0xc] sm:$0xf]
  %v1900 = vld [vmem:[%s5 + $0x10] sm:$0xf]
  %v1901 = vld [vmem:[%s5 + $0x14] sm:$0xf]
  %v1902 = vld [vmem:[%s5 + $0x18] sm:$0xf]
  %v1903 = vld [vmem:[%s5 + $0x1c] sm:$0xf]
  %v1904 = vld [vmem:[%s5 + $0x20] sm:$0xf]
  %v1905 = vld [vmem:[%s5 + $0x24] sm:$0xf]
  %v1906 = vld [vmem:[%s5 + $0x28] sm:$0xf]
  %v1907 = vld [vmem:[%s5 + $0x2c] sm:$0xf]
  %v1908 = vld [vmem:[%s5 + $0x30] sm:$0xf]
  %v1909 = vld [vmem:[%s5 + $0x34] sm:$0xf]
  %v1910 = vld [vmem:[%s5 + $0x38] sm:$0xf]
  %v1911 = vld [vmem:[%s5 + $0x3c] sm:$0xf]
  %v1912 = vld [vmem:[%s5 + $0x40] sm:$0xf]
  %v1913 = vld [vmem:[%s5 + $0x44] sm:$0xf]
  %v1914 = vld [vmem:[%s5 + $0x48] sm:$0xf]
  %v1915 = vld [vmem:[%s5 + $0x4c] sm:$0xf]
  %v1916 = vld [vmem:[%s5 + $0x50] sm:$0xf]
  %v1917 = vld [vmem:[%s5 + $0x54] sm:$0xf]
  %v1918 = vld [vmem:[%s5 + $0x58] sm:$0xf]
  %v1919 = vld [vmem:[%s5 + $0x5c] sm:$0xf]
  %v1920 = vld [vmem:[%s5 + $0x60] sm:$0xf]
  %v1921 = vld [vmem:[%s5 + $0x64] sm:$0xf]
  %v1922 = vld [vmem:[%s5 + $0x68] sm:$0xf]
  %v1923 = vld [vmem:[%s5 + $0x6c] sm:$0xf]
  %v1924 = vld [vmem:[%s5 + $0x70] sm:$0xf]
  %v1925 = vld [vmem:[%s5 + $0x74] sm:$0xf]
  %v1926 = vld [vmem:[%s5 + $0x78] sm:$0xf]
  %v1927 = vld [vmem:[%s5 + $0x7c] sm:$0xf]
  %v1928 = vld [vmem:[#allocation3] sm:$0xee]
  %v1929 = vld [vmem:[#allocation3 + $0x10] sm:$0x11]
  %v1930 = vld [vmem:[%s5 + $0x80] sm:$0xf]
  %v1931 = vld [vmem:[%s5 + $0x84] sm:$0xf]
  %v1932 = vld [vmem:[%s5 + $0x88] sm:$0xf]
  %v1933 = vld [vmem:[%s5 + $0x8c] sm:$0xf]
  %v1934 = vld [vmem:[%s5 + $0x90] sm:$0xf]
  %v1935 = vld [vmem:[%s5 + $0x94] sm:$0xf]
  %v1936 = vld [vmem:[%s5 + $0x98] sm:$0xf]
  %v1937 = vld [vmem:[%s5 + $0x9c] sm:$0xf]
  %v1938 = vld [vmem:[%s5 + $0xa0] sm:$0xf]
  %v1939 = vld [vmem:[%s5 + $0xa4] sm:$0xf]
  %v1940 = vld [vmem:[%s5 + $0xa8] sm:$0xf]
  %v1941 = vld [vmem:[%s5 + $0xac] sm:$0xf]
  %v1942 = vld [vmem:[%s5 + $0xb0] sm:$0xf]
  %v1943 = vld [vmem:[%s5 + $0xb4] sm:$0xf]
  %v1944 = vld [vmem:[%s5 + $0xb8] sm:$0xf]
  %v1945 = vld [vmem:[%s5 + $0xbc] sm:$0xf]
  %v1946 = vld [vmem:[%s5 + $0xc0] sm:$0xf]
  %v1947 = vld [vmem:[%s5 + $0xc4] sm:$0xf]
  %v1948 = vld [vmem:[%s5 + $0xc8] sm:$0xf]
  %v1949 = vld [vmem:[%s5 + $0xcc] sm:$0xf]
  %v1950 = vld [vmem:[%s5 + $0xd0] sm:$0xf]
  %v1951 = vld [vmem:[%s5 + $0xd4] sm:$0xf]
  %v1952 = vld [vmem:[%s5 + $0xd8] sm:$0xf]
  %v1953 = vld [vmem:[%s5 + $0xdc] sm:$0xf]
  %v1954 = vld [vmem:[%s5 + $0xe0] sm:$0xf]
  %v1955 = vld [vmem:[%s5 + $0xe4] sm:$0xf]
  %v1956 = vld [vmem:[%s5 + $0xe8] sm:$0xf]
  %v1957 = vld [vmem:[%s5 + $0xec] sm:$0xf]
  %v1958 = vld [vmem:[%s5 + $0xf0] sm:$0xf]
  %v1959 = vld [vmem:[%s5 + $0xf4] sm:$0xf]
  %v1960 = vld [vmem:[%s5 + $0xf8] sm:$0xf]
  %v1961 = vld [vmem:[%s5 + $0xfc] sm:$0xf]
  %v1965 = vunpack.c.l.b16 %v1928
  %v1966 = vunpack.c.h.b16 %v1928
  %v1967 = vunpack.c.l.b16 %v1895
  %v1968 = vunpack.c.h.b16 %v1895
  %v1969 = vunpack.c.l.b16 %v1929
  %v1970 = vunpack.c.h.b16 %v1929
  %v1971 = vpack.c.b16 %v1967, %v1965
  %v1972 = vpack.c.b16 %v1968, %v1966
  %v1973 = vpack.c.b16 %v1969, %v1969
  %v1974 = vpack.c.b16 %v1970, %v1970
  %vm1975 = vcmask 1046528
  %v1976 = vrot.slane %v1971, 1
  %v1977 = vrot.slane %v1973, 1
  %v1978 = vsel %vm1975, %v1976, %v1977
  %v1979 = vrot.slane %v1972, 1
  %v1980 = vrot.slane %v1974, 1
  %v1981 = vsel %vm1975, %v1979, %v1980
  %v2016 = vunpack.c.l.b16 %v1930
  %v2017 = vunpack.c.l.b16 %v1931
  %v2018 = vunpack.c.l.b16 %v1932
  %v2019 = vunpack.c.l.b16 %v1933
  %v2020 = vunpack.c.l.b16 %v1934
  %v2021 = vunpack.c.l.b16 %v1935
  %v2022 = vunpack.c.l.b16 %v1936
  %v2023 = vunpack.c.l.b16 %v1937
  %v2024 = vunpack.c.l.b16 %v1938
  %v2025 = vunpack.c.l.b16 %v1939
  %v2026 = vunpack.c.l.b16 %v1940
  %v2027 = vunpack.c.l.b16 %v1941
  %v2028 = vunpack.c.l.b16 %v1942
  %v2029 = vunpack.c.l.b16 %v1943
  %v2030 = vunpack.c.l.b16 %v1944
  %v2031 = vunpack.c.l.b16 %v1945
  %v2032 = vunpack.c.l.b16 %v1946
  %v2033 = vunpack.c.l.b16 %v1947
  %v2034 = vunpack.c.l.b16 %v1948
  %v2035 = vunpack.c.l.b16 %v1949
  %v2036 = vunpack.c.l.b16 %v1950
  %v2037 = vunpack.c.l.b16 %v1951
  %v2038 = vunpack.c.l.b16 %v1952
  %v2039 = vunpack.c.l.b16 %v1953
  %v2040 = vunpack.c.l.b16 %v1954
  %v2041 = vunpack.c.l.b16 %v1955
  %v2042 = vunpack.c.l.b16 %v1956
  %v2043 = vunpack.c.l.b16 %v1957
  %v2044 = vunpack.c.l.b16 %v1958
  %v2045 = vunpack.c.l.b16 %v1959
  %v2046 = vunpack.c.l.b16 %v1960
  %v2047 = vunpack.c.l.b16 %v1961
  %v2048 = vpack.c.b16 %v2017, %v2016
  %v2049 = vpack.c.b16 %v2019, %v2018
  %v2050 = vpack.c.b16 %v2021, %v2020
  %v2051 = vpack.c.b16 %v2023, %v2022
  %v2052 = vpack.c.b16 %v2025, %v2024
  %v2053 = vpack.c.b16 %v2027, %v2026
  %v2054 = vpack.c.b16 %v2029, %v2028
  %v2055 = vpack.c.b16 %v2031, %v2030
  %v2056 = vpack.c.b16 %v2033, %v2032
  %v2057 = vpack.c.b16 %v2035, %v2034
  %v2058 = vpack.c.b16 %v2037, %v2036
  %v2059 = vpack.c.b16 %v2039, %v2038
  %v2060 = vpack.c.b16 %v2041, %v2040
  %v2061 = vpack.c.b16 %v2043, %v2042
  %v2062 = vpack.c.b16 %v2045, %v2044
  %v2063 = vpack.c.b16 %v2047, %v2046
  %2080 = vmatprep.subr.bf16.mxu0 0
  %2081 = vmatpush1.bf16.msra.mxu0 %v2048
  %2082 = vmatprep.subr.bf16.mxu0 0
  %2083 = vmatpush1.bf16.msra.mxu0 %v2049
  %2084 = vmatprep.subr.bf16.mxu0 0
  %2085 = vmatpush1.bf16.msra.mxu0 %v2050
  %2086 = vmatprep.subr.bf16.mxu0 0
  %2087 = vmatpush1.bf16.msra.mxu0 %v2051
  %2088 = vmatprep.subr.bf16.mxu0 0
  %2089 = vmatpush1.bf16.msra.mxu0 %v2052
  %2090 = vmatprep.subr.bf16.mxu0 0
  %2091 = vmatpush1.bf16.msra.mxu0 %v2053
  %2092 = vmatprep.subr.bf16.mxu0 0
  %2093 = vmatpush1.bf16.msra.mxu0 %v2054
  %2094 = vmatprep.subr.bf16.mxu0 0
  %2095 = vmatpush1.bf16.msra.mxu0 %v2055
  %2096 = vmatprep.subr.bf16.mxu0 0
  %2097 = vmatpush1.bf16.msra.mxu0 %v2056
  %2098 = vmatprep.subr.bf16.mxu0 0
  %2099 = vmatpush1.bf16.msra.mxu0 %v2057
  %2100 = vmatprep.subr.bf16.mxu0 0
  %2101 = vmatpush1.bf16.msra.mxu0 %v2058
  %2102 = vmatprep.subr.bf16.mxu0 0
  %2103 = vmatpush1.bf16.msra.mxu0 %v2059
  %2104 = vmatprep.subr.bf16.mxu0 0
  %2105 = vmatpush1.bf16.msra.mxu0 %v2060
  %2106 = vmatprep.subr.bf16.mxu0 0
  %2107 = vmatpush1.bf16.msra.mxu0 %v2061
  %2108 = vmatprep.subr.bf16.mxu0 0
  %2109 = vmatpush1.bf16.msra.mxu0 %v2062
  %2110 = vmatprep.subr.bf16.mxu0 0
  %2111 = vmatpush1.bf16.msra.mxu0 %v2063
  %2112 = vmatprep.mubr.bf16.mxu0 %v1981
  %2113 = vmatmul.mubr.bf16.gmra.mrb[0].mxu0 %v1978
  %v2114 = vpop.f32.mrb[0].mxu0
  %v2115 = vadd.f32 0.0, %v2114
  %v2116 = vpop.f32.mrb[0].mxu0
  %v2117 = vpop.f32.mrb[0].mxu0
  %v2118 = vadd.f32 0.0, %v2117
  %v2119 = vpop.f32.mrb[0].mxu0
  %2120 = vdwg.mxu0
  %v2122 = vunpack.c.l.b16 %v1894
  %v2123 = vunpack.c.h.b16 %v1894
  %v2124 = vpack.c.b16 %v1967, %v2122
  %v2125 = vpack.c.b16 %v1968, %v2123
  %v2160 = vunpack.c.l.b16 %v1896
  %v2161 = vunpack.c.l.b16 %v1897
  %v2162 = vunpack.c.l.b16 %v1898
  %v2163 = vunpack.c.l.b16 %v1899
  %v2164 = vunpack.c.l.b16 %v1900
  %v2165 = vunpack.c.l.b16 %v1901
  %v2166 = vunpack.c.l.b16 %v1902
  %v2167 = vunpack.c.l.b16 %v1903
  %v2168 = vunpack.c.l.b16 %v1904
  %v2169 = vunpack.c.l.b16 %v1905
  %v2170 = vunpack.c.l.b16 %v1906
  %v2171 = vunpack.c.l.b16 %v1907
  %v2172 = vunpack.c.l.b16 %v1908
  %v2173 = vunpack.c.l.b16 %v1909
  %v2174 = vunpack.c.l.b16 %v1910
  %v2175 = vunpack.c.l.b16 %v1911
  %v2176 = vunpack.c.l.b16 %v1912
  %v2177 = vunpack.c.l.b16 %v1913
  %v2178 = vunpack.c.l.b16 %v1914
  %v2179 = vunpack.c.l.b16 %v1915
  %v2180 = vunpack.c.l.b16 %v1916
  %v2181 = vunpack.c.l.b16 %v1917
  %v2182 = vunpack.c.l.b16 %v1918
  %v2183 = vunpack.c.l.b16 %v1919
  %v2184 = vunpack.c.l.b16 %v1920
  %v2185 = vunpack.c.l.b16 %v1921
  %v2186 = vunpack.c.l.b16 %v1922
  %v2187 = vunpack.c.l.b16 %v1923
  %v2188 = vunpack.c.l.b16 %v1924
  %v2189 = vunpack.c.l.b16 %v1925
  %v2190 = vunpack.c.l.b16 %v1926
  %v2191 = vunpack.c.l.b16 %v1927
  %v2192 = vpack.c.b16 %v2161, %v2160
  %v2193 = vpack.c.b16 %v2163, %v2162
  %v2194 = vpack.c.b16 %v2165, %v2164
  %v2195 = vpack.c.b16 %v2167, %v2166
  %v2196 = vpack.c.b16 %v2169, %v2168
  %v2197 = vpack.c.b16 %v2171, %v2170
  %v2198 = vpack.c.b16 %v2173, %v2172
  %v2199 = vpack.c.b16 %v2175, %v2174
  %v2200 = vpack.c.b16 %v2177, %v2176
  %v2201 = vpack.c.b16 %v2179, %v2178
  %v2202 = vpack.c.b16 %v2181, %v2180
  %v2203 = vpack.c.b16 %v2183, %v2182
  %v2204 = vpack.c.b16 %v2185, %v2184
  %v2205 = vpack.c.b16 %v2187, %v2186
  %v2206 = vpack.c.b16 %v2189, %v2188
  %v2207 = vpack.c.b16 %v2191, %v2190
  %2224 = vmatprep.subr.bf16.mxu0 0
  %2225 = vmatpush1.bf16.msra.mxu0 %v2192
  %2226 = vmatprep.subr.bf16.mxu0 0
  %2227 = vmatpush1.bf16.msra.mxu0 %v2193
  %2228 = vmatprep.subr.bf16.mxu0 0
  %2229 = vmatpush1.bf16.msra.mxu0 %v2194
  %2230 = vmatprep.subr.bf16.mxu0 0
  %2231 = vmatpush1.bf16.msra.mxu0 %v2195
  %2232 = vmatprep.subr.bf16.mxu0 0
  %2233 = vmatpush1.bf16.msra.mxu0 %v2196
  %2234 = vmatprep.subr.bf16.mxu0 0
  %2235 = vmatpush1.bf16.msra.mxu0 %v2197
  %2236 = vmatprep.subr.bf16.mxu0 0
  %2237 = vmatpush1.bf16.msra.mxu0 %v2198
  %2238 = vmatprep.subr.bf16.mxu0 0
  %2239 = vmatpush1.bf16.msra.mxu0 %v2199
  %2240 = vmatprep.subr.bf16.mxu0 0
  %2241 = vmatpush1.bf16.msra.mxu0 %v2200
  %2242 = vmatprep.subr.bf16.mxu0 0
  %2243 = vmatpush1.bf16.msra.mxu0 %v2201
  %2244 = vmatprep.subr.bf16.mxu0 0
  %2245 = vmatpush1.bf16.msra.mxu0 %v2202
  %2246 = vmatprep.subr.bf16.mxu0 0
  %2247 = vmatpush1.bf16.msra.mxu0 %v2203
  %2248 = vmatprep.subr.bf16.mxu0 0
  %2249 = vmatpush1.bf16.msra.mxu0 %v2204
  %2250 = vmatprep.subr.bf16.mxu0 0
  %2251 = vmatpush1.bf16.msra.mxu0 %v2205
  %2252 = vmatprep.subr.bf16.mxu0 0
  %2253 = vmatpush1.bf16.msra.mxu0 %v2206
  %2254 = vmatprep.subr.bf16.mxu0 0
  %2255 = vmatpush1.bf16.msra.mxu0 %v2207
  %2256 = vmatprep.mubr.bf16.mxu0 %v2125
  %2257 = vmatmul.mubr.bf16.gmra.mrb[0].mxu0 %v2124
  %v2258 = vpop.f32.mrb[0].mxu0
  %v2259 = vadd.f32 %v2115, %v2258
  %v2260 = vpop.f32.mrb[0].mxu0
  %v2261 = vpop.f32.mrb[0].mxu0
  %v2262 = vadd.f32 %v2118, %v2261
  %v2263 = vpop.f32.mrb[0].mxu0
  %2264 = vdwg.mxu0
  %v2265 = vld [vmem:[#allocation3] sm:$0xcc]
  %v2266 = vld [vmem:[#allocation3 + $0x10] sm:$0x33]
  %v2267 = vld [vmem:[%s5 + $0x100] sm:$0xf]
  %v2268 = vld [vmem:[%s5 + $0x104] sm:$0xf]
  %v2269 = vld [vmem:[%s5 + $0x108] sm:$0xf]
  %v2270 = vld [vmem:[%s5 + $0x10c] sm:$0xf]
  %v2271 = vld [vmem:[%s5 + $0x110] sm:$0xf]
  %v2272 = vld [vmem:[%s5 + $0x114] sm:$0xf]
  %v2273 = vld [vmem:[%s5 + $0x118] sm:$0xf]
  %v2274 = vld [vmem:[%s5 + $0x11c] sm:$0xf]
  %v2275 = vld [vmem:[%s5 + $0x120] sm:$0xf]
  %v2276 = vld [vmem:[%s5 + $0x124] sm:$0xf]
  %v2277 = vld [vmem:[%s5 + $0x128] sm:$0xf]
  %v2278 = vld [vmem:[%s5 + $0x12c] sm:$0xf]
  %v2279 = vld [vmem:[%s5 + $0x130] sm:$0xf]
  %v2280 = vld [vmem:[%s5 + $0x134] sm:$0xf]
  %v2281 = vld [vmem:[%s5 + $0x138] sm:$0xf]
  %v2282 = vld [vmem:[%s5 + $0x13c] sm:$0xf]
  %v2283 = vld [vmem:[%s5 + $0x140] sm:$0xf]
  %v2284 = vld [vmem:[%s5 + $0x144] sm:$0xf]
  %v2285 = vld [vmem:[%s5 + $0x148] sm:$0xf]
  %v2286 = vld [vmem:[%s5 + $0x14c] sm:$0xf]
  %v2287 = vld [vmem:[%s5 + $0x150] sm:$0xf]
  %v2288 = vld [vmem:[%s5 + $0x154] sm:$0xf]
  %v2289 = vld [vmem:[%s5 + $0x158] sm:$0xf]
  %v2290 = vld [vmem:[%s5 + $0x15c] sm:$0xf]
  %v2291 = vld [vmem:[%s5 + $0x160] sm:$0xf]
  %v2292 = vld [vmem:[%s5 + $0x164] sm:$0xf]
  %v2293 = vld [vmem:[%s5 + $0x168] sm:$0xf]
  %v2294 = vld [vmem:[%s5 + $0x16c] sm:$0xf]
  %v2295 = vld [vmem:[%s5 + $0x170] sm:$0xf]
  %v2296 = vld [vmem:[%s5 + $0x174] sm:$0xf]
  %v2297 = vld [vmem:[%s5 + $0x178] sm:$0xf]
  %v2298 = vld [vmem:[%s5 + $0x17c] sm:$0xf]
  %v2301 = vunpack.c.l.b16 %v2265
  %v2302 = vunpack.c.h.b16 %v2265
  %v2303 = vunpack.c.l.b16 %v2266
  %v2304 = vunpack.c.h.b16 %v2266
  %v2305 = vpack.c.b16 %v1967, %v2301
  %v2306 = vpack.c.b16 %v1968, %v2302
  %v2307 = vpack.c.b16 %v2303, %v2303
  %v2308 = vpack.c.b16 %v2304, %v2304
  %vm2309 = vcmask 1045504
  %v2310 = vrot.slane %v2305, 2
  %v2311 = vrot.slane %v2307, 2
  %v2312 = vsel %vm2309, %v2310, %v2311
  %v2313 = vrot.slane %v2306, 2
  %v2314 = vrot.slane %v2308, 2
  %v2315 = vsel %vm2309, %v2313, %v2314
  %v2350 = vunpack.c.l.b16 %v2267
  %v2351 = vunpack.c.l.b16 %v2268
  %v2352 = vunpack.c.l.b16 %v2269
  %v2353 = vunpack.c.l.b16 %v2270
  %v2354 = vunpack.c.l.b16 %v2271
  %v2355 = vunpack.c.l.b16 %v2272
  %v2356 = vunpack.c.l.b16 %v2273
  %v2357 = vunpack.c.l.b16 %v2274
  %v2358 = vunpack.c.l.b16 %v2275
  %v2359 = vunpack.c.l.b16 %v2276
  %v2360 = vunpack.c.l.b16 %v2277
  %v2361 = vunpack.c.l.b16 %v2278
  %v2362 = vunpack.c.l.b16 %v2279
  %v2363 = vunpack.c.l.b16 %v2280
  %v2364 = vunpack.c.l.b16 %v2281
  %v2365 = vunpack.c.l.b16 %v2282
  %v2366 = vunpack.c.l.b16 %v2283
  %v2367 = vunpack.c.l.b16 %v2284
  %v2368 = vunpack.c.l.b16 %v2285
  %v2369 = vunpack.c.l.b16 %v2286
  %v2370 = vunpack.c.l.b16 %v2287
  %v2371 = vunpack.c.l.b16 %v2288
  %v2372 = vunpack.c.l.b16 %v2289
  %v2373 = vunpack.c.l.b16 %v2290
  %v2374 = vunpack.c.l.b16 %v2291
  %v2375 = vunpack.c.l.b16 %v2292
  %v2376 = vunpack.c.l.b16 %v2293
  %v2377 = vunpack.c.l.b16 %v2294
  %v2378 = vunpack.c.l.b16 %v2295
  %v2379 = vunpack.c.l.b16 %v2296
  %v2380 = vunpack.c.l.b16 %v2297
  %v2381 = vunpack.c.l.b16 %v2298
  %v2382 = vpack.c.b16 %v2351, %v2350
  %v2383 = vpack.c.b16 %v2353, %v2352
  %v2384 = vpack.c.b16 %v2355, %v2354
  %v2385 = vpack.c.b16 %v2357, %v2356
  %v2386 = vpack.c.b16 %v2359, %v2358
  %v2387 = vpack.c.b16 %v2361, %v2360
  %v2388 = vpack.c.b16 %v2363, %v2362
  %v2389 = vpack.c.b16 %v2365, %v2364
  %v2390 = vpack.c.b16 %v2367, %v2366
  %v2391 = vpack.c.b16 %v2369, %v2368
  %v2392 = vpack.c.b16 %v2371, %v2370
  %v2393 = vpack.c.b16 %v2373, %v2372
  %v2394 = vpack.c.b16 %v2375, %v2374
  %v2395 = vpack.c.b16 %v2377, %v2376
  %v2396 = vpack.c.b16 %v2379, %v2378
  %v2397 = vpack.c.b16 %v2381, %v2380
  %2414 = vmatprep.subr.bf16.mxu0 0
  %2415 = vmatpush1.bf16.msra.mxu0 %v2382
  %2416 = vmatprep.subr.bf16.mxu0 0
  %2417 = vmatpush1.bf16.msra.mxu0 %v2383
  %2418 = vmatprep.subr.bf16.mxu0 0
  %2419 = vmatpush1.bf16.msra.mxu0 %v2384
  %2420 = vmatprep.subr.bf16.mxu0 0
  %2421 = vmatpush1.bf16.msra.mxu0 %v2385
  %2422 = vmatprep.subr.bf16.mxu0 0
  %2423 = vmatpush1.bf16.msra.mxu0 %v2386
  %2424 = vmatprep.subr.bf16.mxu0 0
  %2425 = vmatpush1.bf16.msra.mxu0 %v2387
  %2426 = vmatprep.subr.bf16.mxu0 0
  %2427 = vmatpush1.bf16.msra.mxu0 %v2388
  %2428 = vmatprep.subr.bf16.mxu0 0
  %2429 = vmatpush1.bf16.msra.mxu0 %v2389
  %2430 = vmatprep.subr.bf16.mxu0 0
  %2431 = vmatpush1.bf16.msra.mxu0 %v2390
  %2432 = vmatprep.subr.bf16.mxu0 0
  %2433 = vmatpush1.bf16.msra.mxu0 %v2391
  %2434 = vmatprep.subr.bf16.mxu0 0
  %2435 = vmatpush1.bf16.msra.mxu0 %v2392
  %2436 = vmatprep.subr.bf16.mxu0 0
  %2437 = vmatpush1.bf16.msra.mxu0 %v2393
  %2438 = vmatprep.subr.bf16.mxu0 0
  %2439 = vmatpush1.bf16.msra.mxu0 %v2394
  %2440 = vmatprep.subr.bf16.mxu0 0
  %2441 = vmatpush1.bf16.msra.mxu0 %v2395
  %2442 = vmatprep.subr.bf16.mxu0 0
  %2443 = vmatpush1.bf16.msra.mxu0 %v2396
  %2444 = vmatprep.subr.bf16.mxu0 0
  %2445 = vmatpush1.bf16.msra.mxu0 %v2397
  %2446 = vmatprep.mubr.bf16.mxu0 %v2315
  %2447 = vmatmul.mubr.bf16.gmra.mrb[0].mxu0 %v2312
  %v2448 = vpop.f32.mrb[0].mxu0
  %v2449 = vadd.f32 0.0, %v2448
  %v2450 = vpop.f32.mrb[0].mxu0
  %v2451 = vpop.f32.mrb[0].mxu0
  %v2452 = vadd.f32 0.0, %v2451
  %v2453 = vpop.f32.mrb[0].mxu0
  %2454 = vdwg.mxu0
  %v2455 = vadd.f32 %v2259, %v2449
  %v2456 = vadd.f32 %v2262, %v2452
  %v2457 = vtanh.pop %v2455
  %v2458 = vtanh.pop %v2456
  %2459 = vst [vmem:[%s6] sm:$0xff] %v2457
  %2460 = vst [vmem:[%s6 + $0x8] sm:$0xff] %v2458
  // Predicated region
  $region26: #{_lambda_.1} parent=0 // pred_check
    _
  $region27: #{_lambda_.1} parent=0 // pred_check_branch
    %2462 = sbr.rel (0) target = $region29
  $region28: #{_lambda_.1} parent=0 // pred_region
    _
  $region29: #{_lambda_.1} parent=0 // pred_fallthru
    _
  // Predicated region
  $region30: #{_lambda_.1} parent=0 // pred_check
    _
  $region31: #{_lambda_.1} parent=0 // pred_check_branch
    %2464 = sbr.rel (0) target = $region33
  $region32: #{_lambda_.1} parent=0 // pred_region
    _
  $region33: #{_lambda_.1} parent=0 // pred_fallthru
    _

</llo_original>
